<compile_context>
chip_gen: v7x
topology: tpu7x:2x2x1
jax: 0.10.0
libtpu: 0.0.40
codegen_flags: <defaults>
</compile_context>

<pallas_src>
import functools

import jax
import jax.numpy as jnp
import numpy as np
from jax.experimental import pallas as pl
from jax.experimental.pallas import tpu as pltpu


def _gumbel_sampler_kernel(probs_ref, valid_ref, reps_ref,
                           sreps_ref, smask_ref, ind_ref,
                           *, topk, inv_temp, neg_val):
    # probs_ref : (1, 1, S)  f32   raw logits (module's `probs`)
    # valid_ref : (1, 1, S)  f32   1.0 where mask==True, 0.0 where padded
    # reps_ref  : (1, S, D)  f32
    # sreps_ref : (1, topk, D) f32
    # smask_ref : (1, topk, 1) f32
    # ind_ref   : (1, 1, topk) i32
    S = probs_ref.shape[-1]

    probs = probs_ref[0]            # (1, S)
    valid = valid_ref[0]            # (1, S)
    reps = reps_ref[0]              # (S, D)

    lane = jax.lax.broadcasted_iota(jnp.int32, (1, S), 1)      # position ids

    # logits[:, 0] = 100 + logits.max(-1)
    row_max = jnp.max(probs, axis=-1, keepdims=True)
    logits = jnp.where(lane == 0, 100.0 + row_max, probs)

    # additive padding mask: ~mask * -10000
    top_k_mask = jnp.where(valid > 0.5, 0.0, neg_val)

    selected = lane < 0                                         # (1, S) all-False
    ind_vec = jnp.zeros((1, topk), dtype=jnp.int32)
    k_iota = jax.lax.broadcasted_iota(jnp.int32, (1, topk), 1)

    for i in range(topk):                                       # topk is small & static
        z = (logits + top_k_mask) * inv_temp
        z = z - jnp.max(z, axis=-1, keepdims=True)
        e = jnp.exp(z)
        s = e / jnp.sum(e, axis=-1, keepdims=True)              # softmax(y/T)
        y = jnp.where(selected, 0.0, s)                         # y[y_hard==1] = 0
        # argmax with first-index tie-break (max + min-index of the max)
        m = jnp.max(y, axis=-1, keepdims=True)
        ind = jnp.min(jnp.where(y == m, lane, S), axis=-1, keepdims=True)   # (1, 1)
        picked = lane == ind                                    # (1, S) one-hot
        selected = jnp.logical_or(selected, picked)
        top_k_mask = jnp.where(picked, neg_val, top_k_mask)     # top_k_mask[sel] = -1e4
        ind_vec = jnp.where(k_iota == i, ind, ind_vec)          # record selection order

    # --- eval-mode gather: selected positions in ascending order ---------------------
    sel_f = selected.astype(jnp.float32)                        # (1, S) 0/1
    # rank[p] = #selected positions with index <= p  (1-based), 0 for unselected rows
    lt = (jax.lax.broadcasted_iota(jnp.int32, (S, S), 0)
          <= jax.lax.broadcasted_iota(jnp.int32, (S, S), 1)).astype(jnp.float32)
    rank = jnp.dot(sel_f, lt, preferred_element_type=jnp.float32) * sel_f   # (1, S)
    row_id = (jax.lax.broadcasted_iota(jnp.int32, (topk, S), 0) + 1
              ).astype(jnp.float32)
    gather_oh = (rank == row_id).astype(jnp.float32)            # (topk, S) 0/1

    sreps_ref[0] = jnp.dot(gather_oh, reps,
                           preferred_element_type=jnp.float32,
                           precision=jax.lax.Precision.HIGHEST)  # (topk, D), lane-dense
    smask_ref[0] = jnp.sum(gather_oh * valid, axis=-1, keepdims=True)        # (topk, 1)
    ind_ref[0] = ind_vec                                                     # (1, topk)


def gumbel_sampler(reps, probs, mask, sample_top_k, temperature=0.1):
    """Eval-mode GumbelSampler.forward -> (sampled_reps, sampled_mask, gumbel_indices)."""
    bs, S, D = reps.shape
    topk = int(sample_top_k)

    probs3 = probs.astype(jnp.float32).reshape(bs, 1, S)
    valid3 = mask.astype(jnp.float32).reshape(bs, 1, S)
    reps_f = reps.astype(jnp.float32)

    kernel = functools.partial(_gumbel_sampler_kernel, topk=topk,
                               inv_temp=1.0 / temperature, neg_val=-10000.0)

    out_shape = (
        jax.ShapeDtypeStruct((bs, topk, D), jnp.float32),    # sampled_reps
        jax.ShapeDtypeStruct((bs, topk, 1), jnp.float32),    # sampled_mask (as f32)
        jax.ShapeDtypeStruct((bs, 1, topk), jnp.int32),      # gumbel_indices
    )
    out_specs = (
        pl.BlockSpec((1, topk, D), lambda b: (b, 0, 0)),
        pl.BlockSpec((1, topk, 1), lambda b: (b, 0, 0)),
        pl.BlockSpec((1, 1, topk), lambda b: (b, 0, 0)),
    )

    sreps, smask, inds = pl.pallas_call(
        kernel,
        out_shape=out_shape,
        grid=(bs,),
        in_specs=[
            pl.BlockSpec((1, 1, S), lambda b: (b, 0, 0)),    # probs
            pl.BlockSpec((1, 1, S), lambda b: (b, 0, 0)),    # validity mask (f32)
            pl.BlockSpec((1, S, D), lambda b: (b, 0, 0)),    # reps
        ],
        out_specs=out_specs,
        compiler_params=pltpu.CompilerParams(dimension_semantics=("parallel",)),
    )(probs3, valid3, reps_f)

    sampled_mask = smask.reshape(bs, topk) > 0.5
    gumbel_indices = inds.reshape(bs, topk)
    return sreps, sampled_mask, gumbel_indices


def gumbel_sampler_reference(reps, probs, mask, topk, temperature=0.1):
    """Pure-JAX reference of the same eval-mode math (no Pallas)."""
    bs, S, D = reps.shape
    add_mask = jnp.where(mask, 0.0, -10000.0)
    logits = probs.at[:, 0].set(100.0 + probs.max(axis=-1))
    selected = jnp.zeros((bs, S), dtype=bool)
    tkm = add_mask
    inds = []
    for _ in range(topk):
        s = jax.nn.softmax((logits + tkm) / temperature, axis=-1)
        y = jnp.where(selected, 0.0, s)
        ind = jnp.argmax(y, axis=-1)
        inds.append(ind)
        picked = jnp.arange(S)[None, :] == ind[:, None]
        selected = selected | picked
        tkm = jnp.where(picked, -10000.0, tkm)
    gumbel_indices = jnp.stack(inds, axis=1).astype(jnp.int32)
    # boolean-mask gather == selected positions in ascending order
    order = jnp.sort(jnp.where(selected, jnp.arange(S)[None, :], S), axis=-1)[:, :topk]
    sampled_reps = jnp.take_along_axis(reps, order[..., None], axis=1)
    sampled_mask = jnp.take_along_axis(mask, order, axis=1)
    return sampled_reps, sampled_mask, gumbel_indices


if __name__ == "__main__":
    bs, S, D = 2, 128, 128
    sample_top_k = 4

    key = jax.random.PRNGKey(0)
    k_reps, k_probs = jax.random.split(key)
    reps = jax.random.normal(k_reps, (bs, S, D), dtype=jnp.float32)
    probs = jax.random.normal(k_probs, (bs, S), dtype=jnp.float32)
    lengths = jnp.array([100, 77], dtype=jnp.int32)
    mask = jnp.arange(S, dtype=jnp.int32)[None, :] < lengths[:, None]   # (bs, S) bool

    sreps, smask, inds = gumbel_sampler(reps, probs, mask, sample_top_k)
    sreps, smask, inds = jax.block_until_ready((sreps, smask, inds))

    ref_reps, ref_mask, ref_inds = gumbel_sampler_reference(reps, probs, mask,
                                                            sample_top_k)

    np.testing.assert_allclose(np.asarray(sreps), np.asarray(ref_reps),
                               rtol=1e-5, atol=1e-5)
    assert np.array_equal(np.asarray(smask), np.asarray(ref_mask)), "sampled_mask mismatch"
    assert np.array_equal(np.asarray(inds), np.asarray(ref_inds)), "gumbel_indices mismatch"

    print("KERNEL_OK")
</pallas_src>

<mosaic_0001>
module attributes {stable_mosaic.version = 11 : i64} {
  func.func @_gumbel_sampler_kernel(%arg0: i32, %arg1: memref<1x1x128xf32, #tpu.memory_space<vmem>>, %arg2: memref<1x1x128xf32, #tpu.memory_space<vmem>>, %arg3: memref<1x128x128xf32, #tpu.memory_space<vmem>>, %arg4: memref<1x4x128xf32, #tpu.memory_space<vmem>>, %arg5: memref<1x4x1xf32, #tpu.memory_space<vmem>>, %arg6: memref<1x1x4xi32, #tpu.memory_space<vmem>>) attributes {dimension_semantics = [#tpu.dimension_semantics<parallel>], iteration_bounds = array<i64: 2>, scalar_prefetch = 0 : i64, scratch_operands = 0 : i64, tpu.core_type = #tpu.core_type<tc>, window_params = [{transform_indices = @transform_0, window_bounds = array<i64: 1, 1, 128>}, {transform_indices = @transform_1, window_bounds = array<i64: 1, 1, 128>}, {transform_indices = @transform_2, window_bounds = array<i64: 1, 128, 128>}, {transform_indices = @transform_3, window_bounds = array<i64: 1, 4, 128>}, {transform_indices = @transform_4, window_bounds = array<i64: 1, 4, 1>}, {transform_indices = @transform_5, window_bounds = array<i64: 1, 1, 4>}]} {
    %c0 = arith.constant 0 : index
    %c0_0 = arith.constant 0 : index
    %c0_1 = arith.constant 0 : index
    %0 = vector.load %arg1[%c0, %c0_0, %c0_1] : memref<1x1x128xf32, #tpu.memory_space<vmem>>, vector<1x1x128xf32>
    %1 = vector.shape_cast %0 : vector<1x1x128xf32> to vector<1x128xf32>
    %c0_2 = arith.constant 0 : index
    %c0_3 = arith.constant 0 : index
    %c0_4 = arith.constant 0 : index
    %2 = vector.load %arg2[%c0_2, %c0_3, %c0_4] : memref<1x1x128xf32, #tpu.memory_space<vmem>>, vector<1x1x128xf32>
    %3 = vector.shape_cast %2 : vector<1x1x128xf32> to vector<1x128xf32>
    %c0_5 = arith.constant 0 : index
    %c0_6 = arith.constant 0 : index
    %c0_7 = arith.constant 0 : index
    %4 = vector.load %arg3[%c0_5, %c0_6, %c0_7] : memref<1x128x128xf32, #tpu.memory_space<vmem>>, vector<1x128x128xf32>
    %5 = vector.shape_cast %4 : vector<1x128x128xf32> to vector<128x128xf32>
    %6 = tpu.iota {dimensions = array<i32: 1>} : vector<1x128xi32>
    %cst = arith.constant dense<0xFF800000> : vector<1xf32>
    %7 = vector.multi_reduction <maximumf>, %1, %cst [1] : vector<1x128xf32> to vector<1xf32>
    %8 = vector.shape_cast %7 : vector<1xf32> to vector<1x1xf32>
    %c0_i32 = arith.constant 0 : i32
    %9 = vector.broadcast %c0_i32 : i32 to vector<1x128xi32>
    %10 = arith.cmpi eq, %6, %9 : vector<1x128xi32>
    %cst_8 = arith.constant 1.000000e+02 : f32
    %11 = vector.broadcast %cst_8 : f32 to vector<1x1xf32>
    %12 = arith.addf %11, %8 : vector<1x1xf32>
    %13 = vector.shape_cast %12 : vector<1x1xf32> to vector<1x1xf32>
    %14 = vector.broadcast %13 : vector<1x1xf32> to vector<1x128xf32>
    %15 = arith.select %10, %14, %1 : vector<1x128xi1>, vector<1x128xf32>
    %cst_9 = arith.constant 5.000000e-01 : f32
    %16 = vector.broadcast %cst_9 : f32 to vector<1x128xf32>
    %17 = arith.cmpf ogt, %3, %16 : vector<1x128xf32>
    %cst_10 = arith.constant 0.000000e+00 : f32
    %cst_11 = arith.constant -1.000000e+04 : f32
    %18 = vector.broadcast %cst_10 : f32 to vector<1x128xf32>
    %19 = vector.broadcast %cst_11 : f32 to vector<1x128xf32>
    %20 = arith.select %17, %18, %19 : vector<1x128xi1>, vector<1x128xf32>
    %c0_i32_12 = arith.constant 0 : i32
    %21 = vector.broadcast %c0_i32_12 : i32 to vector<1x128xi32>
    %22 = arith.cmpi slt, %6, %21 : vector<1x128xi32>
    %c0_i32_13 = arith.constant 0 : i32
    %23 = vector.broadcast %c0_i32_13 : i32 to vector<1x4xi32>
    %24 = tpu.iota {dimensions = array<i32: 1>} : vector<1x4xi32>
    %25 = arith.addf %15, %20 : vector<1x128xf32>
    %cst_14 = arith.constant 1.000000e+01 : f32
    %26 = vector.broadcast %cst_14 : f32 to vector<1x128xf32>
    %27 = arith.mulf %25, %26 : vector<1x128xf32>
    %cst_15 = arith.constant dense<0xFF800000> : vector<1xf32>
    %28 = vector.multi_reduction <maximumf>, %27, %cst_15 [1] : vector<1x128xf32> to vector<1xf32>
    %29 = vector.shape_cast %28 : vector<1xf32> to vector<1x1xf32>
    %30 = vector.broadcast %29 : vector<1x1xf32> to vector<1x128xf32>
    %31 = arith.subf %27, %30 : vector<1x128xf32>
    %32 = math.exp %31 : vector<1x128xf32>
    %cst_16 = arith.constant dense<0.000000e+00> : vector<1xf32>
    %33 = vector.multi_reduction <add>, %32, %cst_16 [1] : vector<1x128xf32> to vector<1xf32>
    %34 = vector.shape_cast %33 : vector<1xf32> to vector<1x1xf32>
    %35 = vector.broadcast %34 : vector<1x1xf32> to vector<1x128xf32>
    %36 = arith.divf %32, %35 : vector<1x128xf32>
    %cst_17 = arith.constant 0.000000e+00 : f32
    %37 = vector.broadcast %cst_17 : f32 to vector<1x128xf32>
    %38 = arith.select %22, %37, %36 : vector<1x128xi1>, vector<1x128xf32>
    %cst_18 = arith.constant dense<0xFF800000> : vector<1xf32>
    %39 = vector.multi_reduction <maximumf>, %38, %cst_18 [1] : vector<1x128xf32> to vector<1xf32>
    %40 = vector.shape_cast %39 : vector<1xf32> to vector<1x1xf32>
    %41 = vector.broadcast %40 : vector<1x1xf32> to vector<1x128xf32>
    %42 = arith.cmpf oeq, %38, %41 : vector<1x128xf32>
    %c128_i32 = arith.constant 128 : i32
    %43 = vector.broadcast %c128_i32 : i32 to vector<1x128xi32>
    %44 = arith.select %42, %6, %43 : vector<1x128xi1>, vector<1x128xi32>
    %cst_19 = arith.constant dense<2147483647> : vector<1xi32>
    %45 = vector.multi_reduction <minsi>, %44, %cst_19 [1] : vector<1x128xi32> to vector<1xi32>
    %46 = vector.shape_cast %45 : vector<1xi32> to vector<1x1xi32>
    %47 = vector.broadcast %46 : vector<1x1xi32> to vector<1x128xi32>
    %48 = arith.cmpi eq, %6, %47 : vector<1x128xi32>
    %49 = arith.ori %22, %48 : vector<1x128xi1>
    %cst_20 = arith.constant -1.000000e+04 : f32
    %50 = vector.broadcast %cst_20 : f32 to vector<1x128xf32>
    %51 = arith.select %48, %50, %20 : vector<1x128xi1>, vector<1x128xf32>
    %c0_i32_21 = arith.constant 0 : i32
    %52 = vector.broadcast %c0_i32_21 : i32 to vector<1x4xi32>
    %53 = arith.cmpi eq, %24, %52 : vector<1x4xi32>
    %54 = vector.shape_cast %46 : vector<1x1xi32> to vector<1x1xi32>
    %55 = vector.broadcast %54 : vector<1x1xi32> to vector<1x4xi32>
    %56 = arith.select %53, %55, %23 : vector<1x4xi1>, vector<1x4xi32>
    %57 = arith.addf %15, %51 : vector<1x128xf32>
    %cst_22 = arith.constant 1.000000e+01 : f32
    %58 = vector.broadcast %cst_22 : f32 to vector<1x128xf32>
    %59 = arith.mulf %57, %58 : vector<1x128xf32>
    %cst_23 = arith.constant dense<0xFF800000> : vector<1xf32>
    %60 = vector.multi_reduction <maximumf>, %59, %cst_23 [1] : vector<1x128xf32> to vector<1xf32>
    %61 = vector.shape_cast %60 : vector<1xf32> to vector<1x1xf32>
    %62 = vector.broadcast %61 : vector<1x1xf32> to vector<1x128xf32>
    %63 = arith.subf %59, %62 : vector<1x128xf32>
    %64 = math.exp %63 : vector<1x128xf32>
    %cst_24 = arith.constant dense<0.000000e+00> : vector<1xf32>
    %65 = vector.multi_reduction <add>, %64, %cst_24 [1] : vector<1x128xf32> to vector<1xf32>
    %66 = vector.shape_cast %65 : vector<1xf32> to vector<1x1xf32>
    %67 = vector.broadcast %66 : vector<1x1xf32> to vector<1x128xf32>
    %68 = arith.divf %64, %67 : vector<1x128xf32>
    %cst_25 = arith.constant 0.000000e+00 : f32
    %69 = vector.broadcast %cst_25 : f32 to vector<1x128xf32>
    %70 = arith.select %49, %69, %68 : vector<1x128xi1>, vector<1x128xf32>
    %cst_26 = arith.constant dense<0xFF800000> : vector<1xf32>
    %71 = vector.multi_reduction <maximumf>, %70, %cst_26 [1] : vector<1x128xf32> to vector<1xf32>
    %72 = vector.shape_cast %71 : vector<1xf32> to vector<1x1xf32>
    %73 = vector.broadcast %72 : vector<1x1xf32> to vector<1x128xf32>
    %74 = arith.cmpf oeq, %70, %73 : vector<1x128xf32>
    %c128_i32_27 = arith.constant 128 : i32
    %75 = vector.broadcast %c128_i32_27 : i32 to vector<1x128xi32>
    %76 = arith.select %74, %6, %75 : vector<1x128xi1>, vector<1x128xi32>
    %cst_28 = arith.constant dense<2147483647> : vector<1xi32>
    %77 = vector.multi_reduction <minsi>, %76, %cst_28 [1] : vector<1x128xi32> to vector<1xi32>
    %78 = vector.shape_cast %77 : vector<1xi32> to vector<1x1xi32>
    %79 = vector.broadcast %78 : vector<1x1xi32> to vector<1x128xi32>
    %80 = arith.cmpi eq, %6, %79 : vector<1x128xi32>
    %81 = arith.ori %49, %80 : vector<1x128xi1>
    %cst_29 = arith.constant -1.000000e+04 : f32
    %82 = vector.broadcast %cst_29 : f32 to vector<1x128xf32>
    %83 = arith.select %80, %82, %51 : vector<1x128xi1>, vector<1x128xf32>
    %c1_i32 = arith.constant 1 : i32
    %84 = vector.broadcast %c1_i32 : i32 to vector<1x4xi32>
    %85 = arith.cmpi eq, %24, %84 : vector<1x4xi32>
    %86 = vector.shape_cast %78 : vector<1x1xi32> to vector<1x1xi32>
    %87 = vector.broadcast %86 : vector<1x1xi32> to vector<1x4xi32>
    %88 = arith.select %85, %87, %56 : vector<1x4xi1>, vector<1x4xi32>
    %89 = arith.addf %15, %83 : vector<1x128xf32>
    %cst_30 = arith.constant 1.000000e+01 : f32
    %90 = vector.broadcast %cst_30 : f32 to vector<1x128xf32>
    %91 = arith.mulf %89, %90 : vector<1x128xf32>
    %cst_31 = arith.constant dense<0xFF800000> : vector<1xf32>
    %92 = vector.multi_reduction <maximumf>, %91, %cst_31 [1] : vector<1x128xf32> to vector<1xf32>
    %93 = vector.shape_cast %92 : vector<1xf32> to vector<1x1xf32>
    %94 = vector.broadcast %93 : vector<1x1xf32> to vector<1x128xf32>
    %95 = arith.subf %91, %94 : vector<1x128xf32>
    %96 = math.exp %95 : vector<1x128xf32>
    %cst_32 = arith.constant dense<0.000000e+00> : vector<1xf32>
    %97 = vector.multi_reduction <add>, %96, %cst_32 [1] : vector<1x128xf32> to vector<1xf32>
    %98 = vector.shape_cast %97 : vector<1xf32> to vector<1x1xf32>
    %99 = vector.broadcast %98 : vector<1x1xf32> to vector<1x128xf32>
    %100 = arith.divf %96, %99 : vector<1x128xf32>
    %cst_33 = arith.constant 0.000000e+00 : f32
    %101 = vector.broadcast %cst_33 : f32 to vector<1x128xf32>
    %102 = arith.select %81, %101, %100 : vector<1x128xi1>, vector<1x128xf32>
    %cst_34 = arith.constant dense<0xFF800000> : vector<1xf32>
    %103 = vector.multi_reduction <maximumf>, %102, %cst_34 [1] : vector<1x128xf32> to vector<1xf32>
    %104 = vector.shape_cast %103 : vector<1xf32> to vector<1x1xf32>
    %105 = vector.broadcast %104 : vector<1x1xf32> to vector<1x128xf32>
    %106 = arith.cmpf oeq, %102, %105 : vector<1x128xf32>
    %c128_i32_35 = arith.constant 128 : i32
    %107 = vector.broadcast %c128_i32_35 : i32 to vector<1x128xi32>
    %108 = arith.select %106, %6, %107 : vector<1x128xi1>, vector<1x128xi32>
    %cst_36 = arith.constant dense<2147483647> : vector<1xi32>
    %109 = vector.multi_reduction <minsi>, %108, %cst_36 [1] : vector<1x128xi32> to vector<1xi32>
    %110 = vector.shape_cast %109 : vector<1xi32> to vector<1x1xi32>
    %111 = vector.broadcast %110 : vector<1x1xi32> to vector<1x128xi32>
    %112 = arith.cmpi eq, %6, %111 : vector<1x128xi32>
    %113 = arith.ori %81, %112 : vector<1x128xi1>
    %cst_37 = arith.constant -1.000000e+04 : f32
    %114 = vector.broadcast %cst_37 : f32 to vector<1x128xf32>
    %115 = arith.select %112, %114, %83 : vector<1x128xi1>, vector<1x128xf32>
    %c2_i32 = arith.constant 2 : i32
    %116 = vector.broadcast %c2_i32 : i32 to vector<1x4xi32>
    %117 = arith.cmpi eq, %24, %116 : vector<1x4xi32>
    %118 = vector.shape_cast %110 : vector<1x1xi32> to vector<1x1xi32>
    %119 = vector.broadcast %118 : vector<1x1xi32> to vector<1x4xi32>
    %120 = arith.select %117, %119, %88 : vector<1x4xi1>, vector<1x4xi32>
    %121 = arith.addf %15, %115 : vector<1x128xf32>
    %cst_38 = arith.constant 1.000000e+01 : f32
    %122 = vector.broadcast %cst_38 : f32 to vector<1x128xf32>
    %123 = arith.mulf %121, %122 : vector<1x128xf32>
    %cst_39 = arith.constant dense<0xFF800000> : vector<1xf32>
    %124 = vector.multi_reduction <maximumf>, %123, %cst_39 [1] : vector<1x128xf32> to vector<1xf32>
    %125 = vector.shape_cast %124 : vector<1xf32> to vector<1x1xf32>
    %126 = vector.broadcast %125 : vector<1x1xf32> to vector<1x128xf32>
    %127 = arith.subf %123, %126 : vector<1x128xf32>
    %128 = math.exp %127 : vector<1x128xf32>
    %cst_40 = arith.constant dense<0.000000e+00> : vector<1xf32>
    %129 = vector.multi_reduction <add>, %128, %cst_40 [1] : vector<1x128xf32> to vector<1xf32>
    %130 = vector.shape_cast %129 : vector<1xf32> to vector<1x1xf32>
    %131 = vector.broadcast %130 : vector<1x1xf32> to vector<1x128xf32>
    %132 = arith.divf %128, %131 : vector<1x128xf32>
    %cst_41 = arith.constant 0.000000e+00 : f32
    %133 = vector.broadcast %cst_41 : f32 to vector<1x128xf32>
    %134 = arith.select %113, %133, %132 : vector<1x128xi1>, vector<1x128xf32>
    %cst_42 = arith.constant dense<0xFF800000> : vector<1xf32>
    %135 = vector.multi_reduction <maximumf>, %134, %cst_42 [1] : vector<1x128xf32> to vector<1xf32>
    %136 = vector.shape_cast %135 : vector<1xf32> to vector<1x1xf32>
    %137 = vector.broadcast %136 : vector<1x1xf32> to vector<1x128xf32>
    %138 = arith.cmpf oeq, %134, %137 : vector<1x128xf32>
    %c128_i32_43 = arith.constant 128 : i32
    %139 = vector.broadcast %c128_i32_43 : i32 to vector<1x128xi32>
    %140 = arith.select %138, %6, %139 : vector<1x128xi1>, vector<1x128xi32>
    %cst_44 = arith.constant dense<2147483647> : vector<1xi32>
    %141 = vector.multi_reduction <minsi>, %140, %cst_44 [1] : vector<1x128xi32> to vector<1xi32>
    %142 = vector.shape_cast %141 : vector<1xi32> to vector<1x1xi32>
    %143 = vector.broadcast %142 : vector<1x1xi32> to vector<1x128xi32>
    %144 = arith.cmpi eq, %6, %143 : vector<1x128xi32>
    %145 = arith.ori %113, %144 : vector<1x128xi1>
    %c3_i32 = arith.constant 3 : i32
    %146 = vector.broadcast %c3_i32 : i32 to vector<1x4xi32>
    %147 = arith.cmpi eq, %24, %146 : vector<1x4xi32>
    %148 = vector.shape_cast %142 : vector<1x1xi32> to vector<1x1xi32>
    %149 = vector.broadcast %148 : vector<1x1xi32> to vector<1x4xi32>
    %150 = arith.select %147, %149, %120 : vector<1x4xi1>, vector<1x4xi32>
    %151 = arith.extui %145 : vector<1x128xi1> to vector<1x128xi32>
    %152 = arith.sitofp %151 : vector<1x128xi32> to vector<1x128xf32>
    %153 = tpu.iota {dimensions = array<i32: 0>} : vector<128x128xi32>
    %154 = tpu.iota {dimensions = array<i32: 1>} : vector<128x128xi32>
    %155 = arith.cmpi sle, %153, %154 : vector<128x128xi32>
    %156 = arith.extui %155 : vector<128x128xi1> to vector<128x128xi32>
    %157 = arith.sitofp %156 : vector<128x128xi32> to vector<128x128xf32>
    %cst_45 = arith.constant dense<0.000000e+00> : vector<1x128xf32>
    %158 = tpu.matmul %152, %157, %cst_45 {dimension_numbers = #tpu.dot_dimension_numbers<[1], [0], [0], [1], [0, 0, 1, 1], [], []>} : vector<1x128xf32>, vector<128x128xf32>, vector<1x128xf32> -> vector<1x128xf32>
    %159 = arith.mulf %158, %152 : vector<1x128xf32>
    %160 = tpu.iota {dimensions = array<i32: 0>} : vector<4x128xi32>
    %c1_i32_46 = arith.constant 1 : i32
    %161 = vector.broadcast %c1_i32_46 : i32 to vector<4x128xi32>
    %162 = arith.addi %160, %161 : vector<4x128xi32>
    %163 = arith.sitofp %162 : vector<4x128xi32> to vector<4x128xf32>
    %164 = vector.broadcast %159 : vector<1x128xf32> to vector<4x128xf32>
    %165 = arith.cmpf oeq, %164, %163 : vector<4x128xf32>
    %166 = arith.extui %165 : vector<4x128xi1> to vector<4x128xi32>
    %167 = arith.sitofp %166 : vector<4x128xi32> to vector<4x128xf32>
    %cst_47 = arith.constant dense<0.000000e+00> : vector<4x128xf32>
    %168 = tpu.matmul %167, %5, %cst_47 {dimension_numbers = #tpu.dot_dimension_numbers<[1], [0], [0], [1], [0, 0, 1, 1], [], []>, precision = #tpu.contract_precision<fp32>} : vector<4x128xf32>, vector<128x128xf32>, vector<4x128xf32> -> vector<4x128xf32>
    %c0_48 = arith.constant 0 : index
    %c0_49 = arith.constant 0 : index
    %c0_50 = arith.constant 0 : index
    %169 = vector.load %arg4[%c0_48, %c0_49, %c0_50] : memref<1x4x128xf32, #tpu.memory_space<vmem>>, vector<1x4x128xf32>
    %170 = vector.shape_cast %169 : vector<1x4x128xf32> to vector<4x128xf32>
    %171 = vector.shape_cast %168 : vector<4x128xf32> to vector<1x4x128xf32>
    tpu.vector_store %arg4[%c0_48, %c0_49, %c0_50], %171 {strides = array<i32>} : memref<1x4x128xf32, #tpu.memory_space<vmem>>, vector<1x4x128xf32>,
    %172 = vector.broadcast %3 : vector<1x128xf32> to vector<4x128xf32>
    %173 = arith.mulf %167, %172 : vector<4x128xf32>
    %cst_51 = arith.constant dense<0.000000e+00> : vector<4xf32>
    %174 = vector.multi_reduction <add>, %173, %cst_51 [1] : vector<4x128xf32> to vector<4xf32>
    %175 = vector.shape_cast %174 : vector<4xf32> to vector<4x1xf32>
    %c0_52 = arith.constant 0 : index
    %c0_53 = arith.constant 0 : index
    %c0_54 = arith.constant 0 : index
    %176 = vector.load %arg5[%c0_52, %c0_53, %c0_54] : memref<1x4x1xf32, #tpu.memory_space<vmem>>, vector<1x4x1xf32>
    %177 = vector.shape_cast %176 : vector<1x4x1xf32> to vector<4x1xf32>
    %178 = vector.shape_cast %175 : vector<4x1xf32> to vector<1x4x1xf32>
    tpu.vector_store %arg5[%c0_52, %c0_53, %c0_54], %178 {strides = array<i32>} : memref<1x4x1xf32, #tpu.memory_space<vmem>>, vector<1x4x1xf32>,
    %c0_55 = arith.constant 0 : index
    %c0_56 = arith.constant 0 : index
    %c0_57 = arith.constant 0 : index
    %179 = vector.load %arg6[%c0_55, %c0_56, %c0_57] : memref<1x1x4xi32, #tpu.memory_space<vmem>>, vector<1x1x4xi32>
    %180 = vector.shape_cast %179 : vector<1x1x4xi32> to vector<1x4xi32>
    %181 = vector.shape_cast %150 : vector<1x4xi32> to vector<1x1x4xi32>
    tpu.vector_store %arg6[%c0_55, %c0_56, %c0_57], %181 {strides = array<i32>} : memref<1x1x4xi32, #tpu.memory_space<vmem>>, vector<1x1x4xi32>,
    return
  }
  func.func @transform_0(%arg0: i32) -> (i32, i32, i32) {
    %c0_i32 = arith.constant 0 : i32
    %c0_i32_0 = arith.constant 0 : i32
    %c0_i32_1 = arith.constant 0 : i32
    return %arg0, %c0_i32, %c0_i32_0 : i32, i32, i32
  }
  func.func @transform_1(%arg0: i32) -> (i32, i32, i32) {
    %c0_i32 = arith.constant 0 : i32
    %c0_i32_0 = arith.constant 0 : i32
    %c0_i32_1 = arith.constant 0 : i32
    return %arg0, %c0_i32, %c0_i32_0 : i32, i32, i32
  }
  func.func @transform_2(%arg0: i32) -> (i32, i32, i32) {
    %c0_i32 = arith.constant 0 : i32
    %c0_i32_0 = arith.constant 0 : i32
    %c0_i32_1 = arith.constant 0 : i32
    return %arg0, %c0_i32, %c0_i32_0 : i32, i32, i32
  }
  func.func @transform_3(%arg0: i32) -> (i32, i32, i32) {
    %c0_i32 = arith.constant 0 : i32
    %c0_i32_0 = arith.constant 0 : i32
    %c0_i32_1 = arith.constant 0 : i32
    return %arg0, %c0_i32, %c0_i32_0 : i32, i32, i32
  }
  func.func @transform_4(%arg0: i32) -> (i32, i32, i32) {
    %c0_i32 = arith.constant 0 : i32
    %c0_i32_0 = arith.constant 0 : i32
    %c0_i32_1 = arith.constant 0 : i32
    return %arg0, %c0_i32, %c0_i32_0 : i32, i32, i32
  }
  func.func @transform_5(%arg0: i32) -> (i32, i32, i32) {
    %c0_i32 = arith.constant 0 : i32
    %c0_i32_0 = arith.constant 0 : i32
    %c0_i32_1 = arith.constant 0 : i32
    return %arg0, %c0_i32, %c0_i32_0 : i32, i32, i32
  }
}

</mosaic_0001>

<llo_original>
// kernel: tpu_custom_call.1
$region0: #{tpu_custom_call.1}
  #allocation0 [shape = 'u32[]', space=smem, size = 0x4, offset = 0x4, fixed_abs, tag = 'smem constant byte address 0x4 - core index']
  #allocation1 [shape = 'u32[144,128]{1,0:T(1,128)}', space=vmem, size = 0x12000, scoped, tag = 'internal scratch']
  %s0 = inlined_call_operand.hbm [shape: f32[2,1,128], index: 0, kind: input, shape index: {}]
  %s1 = inlined_call_operand.vmem [shape: f32[2,1,128], index: 1, kind: input, shape index: {}]
  %s2 = inlined_call_operand.hbm [shape: f32[2,128,128], index: 2, kind: input, shape index: {}]
  %s3 = inlined_call_operand.hbm [shape: f32[2,4,128], index: 3, kind: output, shape index: {0}]
  %s4 = inlined_call_operand.vmem [shape: f32[2,4,1], index: 4, kind: output, shape index: {1}]
  %s5 = inlined_call_operand.hbm [shape: s32[2,1,4], index: 5, kind: output, shape index: {2}]
  %6 = xla_tuple %s3, %s4, %s5
  %s7 = sld [smem:[#allocation0]]
  $region69: #{tpu_custom_call.1} parent=0
    _
  %s9 = ssub.s32 1, %s7
  %s10 = scalar_select 0, %s9, %s7
  $region1: #{tpu_custom_call.1} parent=0
    #allocation2 [shape = 'u8[1024]{0}', space=vmem, size = 0x400, scoped, tag = 'input window, operand 0']
    #allocation3 [shape = 's32[2]{0}', space=sflag, size = 0x8, scoped, tag = 'scoped memory for tpu_custom_call.1']
    #allocation4 [shape = 's32[2]{0}', space=sflag, size = 0x8, scoped, tag = 'scoped memory for tpu_custom_call.1']
    #allocation5 [shape = 'u8[131072]{0}', space=vmem, size = 0x20000, scoped, tag = 'input window, operand 2']
    #allocation6 [shape = 's32[2]{0}', space=sflag, size = 0x8, scoped, tag = 'scoped memory for tpu_custom_call.1']
    #allocation7 [shape = 'u8[4096]{0}', space=vmem, size = 0x1000, scoped, tag = 'output window, operand 0']
    #allocation8 [shape = 'u8[1024]{0}', space=vmem, size = 0x400, scoped, tag = 'output window, operand 2']
    #allocation9 [shape = 's32[2]{0}', space=sflag, size = 0x8, scoped, tag = 'scoped memory for tpu_custom_call.1']
    %11 = vsyncpa [#allocation3], 0
    %s12 = scalar_lea.sflag [#allocation3], 1
    %13 = vsyncpa %s12, 0
    %14 = vsyncpa [#allocation6], 0
    %s15 = scalar_lea.sflag [#allocation6], 1
    %16 = vsyncpa %s15, 0
    %17 = vsyncpa [#allocation4], 0
    %s18 = scalar_lea.sflag [#allocation4], 1
    %19 = vsyncpa %s18, 0
    %20 = vsyncpa [#allocation9], 0
    %s21 = scalar_lea.sflag [#allocation9], 1
    %22 = vsyncpa %s21, 0
    loop: start=0, step=1, limit=4
    $region2: #{tpu_custom_call.1} parent=1 // loop_pre_header
      _
    $region3: #{tpu_custom_call.1} parent=1 // loop_header
      %s24 = sphi 0, %s28
      %p25 = scmp.ge.s32.totalorder %s24, 4
      %s34 = sphi 0, %s36
      %s37 = sphi 0, %s34
      %s38 = sphi 0, %s37
      %s54 = sphi 0, %s38
      %s60 = sphi 0, %s62
      %s63 = sphi 0, %s60
      %s64 = sphi 0, %s63
      %s80 = sphi 0, %s64
      %s86 = sphi 0, %s88
      %s89 = sphi 0, %s86
      %s90 = sphi 0, %s89
      %s106 = sphi 0, %s90
      %s112 = sphi 0, %s114
      %s115 = sphi 0, %s112
      %s116 = sphi 0, %s115
      %s132 = sphi 0, %s116
      %s138 = sphi 0, %s140
      %s141 = sphi 0, %s138
      %s142 = sphi 0, %s141
      %s158 = sphi 0, %s142
      %s164 = sphi 0, %s166
      %s167 = sphi 0, %s164
      %s168 = sphi 0, %s167
      %s184 = sphi 0, %s168
    $region4: #{tpu_custom_call.1} parent=1 // loop_header_branch
      %27 = sbr.rel (%p25) target = $region8
    $region5: #{tpu_custom_call.1} parent=1 // loop_body
      %s29 = ssub.s32 %s24, 1
      %s30 = ssub.s32 %s24, 2
      %s31 = sadd.s32 %s24, 1
      %s32 = ssub.s32 %s24, %s31
      %p33 = scmp.eq.s32.totalorder %s32, 0
      %s35 = sadd.s32 %s34, 1
      %s36 = scalar_select %p33, %s34, %s35
      %p39 = pneg %p33
      %p40 = scmp.eq.s32.totalorder %s24, 1
      %p41 = por %p39, %p40
      %p42 = scmp.ne.s32.totalorder %s34, %s37
      %p43 = scmp.eq.s32.totalorder %s24, 0
      %p44 = por %p42, %p43
      %p45 = scmp.ne.s32.totalorder %s34, %s37
      %p46 = scmp.eq.s32.totalorder %s29, 1
      %p47 = por %p45, %p46
      %p48 = scmp.ne.s32.totalorder %s37, %s38
      %p49 = scmp.eq.s32.totalorder %s29, 0
      %p50 = por %p48, %p49
      %p51 = scmp.ne.s32.totalorder %s37, %s38
      %p52 = scmp.eq.s32.totalorder %s30, 1
      %p53 = por %p51, %p52
      %p55 = scmp.ne.s32.totalorder %s38, %s54
      %p56 = scmp.eq.s32.totalorder %s30, 0
      %p57 = por %p55, %p56
      %s58 = ssub.s32 %s24, %s31
      %p59 = scmp.eq.s32.totalorder %s58, 0
      %s61 = sadd.s32 %s60, 1
      %s62 = scalar_select %p59, %s60, %s61
      %p65 = pneg %p59
      %p66 = scmp.eq.s32.totalorder %s24, 1
      %p67 = por %p65, %p66
      %p68 = scmp.ne.s32.totalorder %s60, %s63
      %p69 = scmp.eq.s32.totalorder %s24, 0
      %p70 = por %p68, %p69
      %p71 = scmp.ne.s32.totalorder %s60, %s63
      %p72 = scmp.eq.s32.totalorder %s29, 1
      %p73 = por %p71, %p72
      %p74 = scmp.ne.s32.totalorder %s63, %s64
      %p75 = scmp.eq.s32.totalorder %s29, 0
      %p76 = por %p74, %p75
      %p77 = scmp.ne.s32.totalorder %s63, %s64
      %p78 = scmp.eq.s32.totalorder %s30, 1
      %p79 = por %p77, %p78
      %p81 = scmp.ne.s32.totalorder %s64, %s80
      %p82 = scmp.eq.s32.totalorder %s30, 0
      %p83 = por %p81, %p82
      %s84 = ssub.s32 %s24, %s31
      %p85 = scmp.eq.s32.totalorder %s84, 0
      %s87 = sadd.s32 %s86, 1
      %s88 = scalar_select %p85, %s86, %s87
      %p91 = pneg %p85
      %p92 = scmp.eq.s32.totalorder %s24, 1
      %p93 = por %p91, %p92
      %p94 = scmp.ne.s32.totalorder %s86, %s89
      %p95 = scmp.eq.s32.totalorder %s24, 0
      %p96 = por %p94, %p95
      %p97 = scmp.ne.s32.totalorder %s86, %s89
      %p98 = scmp.eq.s32.totalorder %s29, 1
      %p99 = por %p97, %p98
      %p100 = scmp.ne.s32.totalorder %s89, %s90
      %p101 = scmp.eq.s32.totalorder %s29, 0
      %p102 = por %p100, %p101
      %p103 = scmp.ne.s32.totalorder %s89, %s90
      %p104 = scmp.eq.s32.totalorder %s30, 1
      %p105 = por %p103, %p104
      %p107 = scmp.ne.s32.totalorder %s90, %s106
      %p108 = scmp.eq.s32.totalorder %s30, 0
      %p109 = por %p107, %p108
      %s110 = ssub.s32 %s24, %s31
      %p111 = scmp.eq.s32.totalorder %s110, 0
      %s113 = sadd.s32 %s112, 1
      %s114 = scalar_select %p111, %s112, %s113
      %p117 = pneg %p111
      %p118 = scmp.eq.s32.totalorder %s24, 1
      %p119 = por %p117, %p118
      %p120 = scmp.ne.s32.totalorder %s112, %s115
      %p121 = scmp.eq.s32.totalorder %s24, 0
      %p122 = por %p120, %p121
      %p123 = scmp.ne.s32.totalorder %s112, %s115
      %p124 = scmp.eq.s32.totalorder %s29, 1
      %p125 = por %p123, %p124
      %p126 = scmp.ne.s32.totalorder %s115, %s116
      %p127 = scmp.eq.s32.totalorder %s29, 0
      %p128 = por %p126, %p127
      %p129 = scmp.ne.s32.totalorder %s115, %s116
      %p130 = scmp.eq.s32.totalorder %s30, 1
      %p131 = por %p129, %p130
      %p133 = scmp.ne.s32.totalorder %s116, %s132
      %p134 = scmp.eq.s32.totalorder %s30, 0
      %p135 = por %p133, %p134
      %s136 = ssub.s32 %s24, %s31
      %p137 = scmp.eq.s32.totalorder %s136, 0
      %s139 = sadd.s32 %s138, 1
      %s140 = scalar_select %p137, %s138, %s139
      %p143 = pneg %p137
      %p144 = scmp.eq.s32.totalorder %s24, 1
      %p145 = por %p143, %p144
      %p146 = scmp.ne.s32.totalorder %s138, %s141
      %p147 = scmp.eq.s32.totalorder %s24, 0
      %p148 = por %p146, %p147
      %p149 = scmp.ne.s32.totalorder %s138, %s141
      %p150 = scmp.eq.s32.totalorder %s29, 1
      %p151 = por %p149, %p150
      %p152 = scmp.ne.s32.totalorder %s141, %s142
      %p153 = scmp.eq.s32.totalorder %s29, 0
      %p154 = por %p152, %p153
      %p155 = scmp.ne.s32.totalorder %s141, %s142
      %p156 = scmp.eq.s32.totalorder %s30, 1
      %p157 = por %p155, %p156
      %p159 = scmp.ne.s32.totalorder %s142, %s158
      %p160 = scmp.eq.s32.totalorder %s30, 0
      %p161 = por %p159, %p160
      %s162 = ssub.s32 %s24, %s31
      %p163 = scmp.eq.s32.totalorder %s162, 0
      %s165 = sadd.s32 %s164, 1
      %s166 = scalar_select %p163, %s164, %s165
      %p169 = pneg %p163
      %p170 = scmp.eq.s32.totalorder %s24, 1
      %p171 = por %p169, %p170
      %p172 = scmp.ne.s32.totalorder %s164, %s167
      %p173 = scmp.eq.s32.totalorder %s24, 0
      %p174 = por %p172, %p173
      %p175 = scmp.ne.s32.totalorder %s164, %s167
      %p176 = scmp.eq.s32.totalorder %s29, 1
      %p177 = por %p175, %p176
      %p178 = scmp.ne.s32.totalorder %s167, %s168
      %p179 = scmp.eq.s32.totalorder %s29, 0
      %p180 = por %p178, %p179
      %p181 = scmp.ne.s32.totalorder %s167, %s168
      %p182 = scmp.eq.s32.totalorder %s30, 1
      %p183 = por %p181, %p182
      %p185 = scmp.ne.s32.totalorder %s168, %s184
      %p186 = scmp.eq.s32.totalorder %s30, 0
      %p187 = por %p185, %p186
      %p188 = scmp.le.s32.totalorder 1, %s24
      %p189 = scmp.lt.s32.totalorder %s24, 3
      %p190 = pnand %p188, %p189
      %p191 = pneg %p190
      // Predicated region
      $region9: #{tpu_custom_call.1} parent=5 // pred_check
        _
      $region10: #{tpu_custom_call.1} parent=5 // pred_check_branch
        %193 = sbr.rel (%p190) target = $region12
      $region11: #{tpu_custom_call.1} parent=5 // pred_region
        %s194 = ssub.s32 %s24, 1
      $region12: #{tpu_custom_call.1} parent=5 // pred_fallthru
        _
      %p195 = scmp.lt.s32.totalorder %s24, 2
      // Predicated region
      $region13: #{tpu_custom_call.1} parent=5 // pred_check
        %p196 = pneg %p195
      $region14: #{tpu_custom_call.1} parent=5 // pred_check_branch
        %198 = sbr.rel (%p196) target = $region16
      $region15: #{tpu_custom_call.1} parent=5 // pred_region
        // Predicated region
        $region17: #{tpu_custom_call.1} parent=15 // pred_check
          %p199 = pneg %p44
        $region18: #{tpu_custom_call.1} parent=15 // pred_check_branch
          %201 = sbr.rel (%p199) target = $region20
        $region19: #{tpu_custom_call.1} parent=15 // pred_region
          %s202 = sand.u32 %s34, 1
          %s203 = scalar_lea.sflag [#allocation3], %s202
          %s204 = sand.u32 %s34, 1
          %s205 = scalar_lea.vmem [#allocation2], %s204
          %s207 = ssub.s32 16, 16
          %208 = vsyncadd %s203, %s207
          %s209 = smul.addr %s24, 16
          %s210 = scalar_lea.hbm %s0, %s209
          %s212 = sshll.u32 %s205, 4
          %s213 = int_to_ptr.vmem [resolvable:$true] %s212
          %215 = dma.hbm_to_vmem [thread:$0]  %s210, 16, %s213, %s203
        $region20: #{tpu_custom_call.1} parent=15 // pred_fallthru
          _
        // Predicated region
        $region21: #{tpu_custom_call.1} parent=15 // pred_check
          %p216 = pneg %p70
        $region22: #{tpu_custom_call.1} parent=15 // pred_check_branch
          %218 = sbr.rel (%p216) target = $region24
        $region23: #{tpu_custom_call.1} parent=15 // pred_region
          %p219 = scmp.lt.s32.totalorder %s24, 1
          %s220 = scalar_select %p219, %s24, 1
          %s221 = scalar_lea.vmem %s1, %s220
        $region24: #{tpu_custom_call.1} parent=15 // pred_fallthru
          _
        // Predicated region
        $region25: #{tpu_custom_call.1} parent=15 // pred_check
          %p222 = pneg %p96
        $region26: #{tpu_custom_call.1} parent=15 // pred_check_branch
          %224 = sbr.rel (%p222) target = $region28
        $region27: #{tpu_custom_call.1} parent=15 // pred_region
          %s225 = sand.u32 %s86, 1
          %s226 = scalar_lea.sflag [#allocation6], %s225
          %s227 = sand.u32 %s86, 1
          %s228 = smul.addr %s227, 128
          %s229 = scalar_lea.vmem [#allocation5], %s228
          %s231 = ssub.s32 2048, 2048
          %232 = vsyncadd %s226, %s231
          %s233 = smul.addr %s24, 16
          %s234 = smul.addr %s233, 128
          %s235 = scalar_lea.hbm %s2, %s234
          %s236 = sshll.u32 %s229, 4
          %s237 = int_to_ptr.vmem [resolvable:$true] %s236
          %242 = dma.hbm_to_vmem [thread:$0]  %s235, 2048, %s237, %s226, 128, 128, 8
        $region28: #{tpu_custom_call.1} parent=15 // pred_fallthru
          _
      $region16: #{tpu_custom_call.1} parent=5 // pred_fallthru
        _
      %p243 = scmp.le.s32.totalorder 1, %s24
      %p244 = scmp.lt.s32.totalorder %s24, 3
      %p245 = pnand %p243, %p244
      %p246 = pneg %p245
      // Predicated region
      $region29: #{tpu_custom_call.1} parent=5 // pred_check
        _
      $region30: #{tpu_custom_call.1} parent=5 // pred_check_branch
        %248 = sbr.rel (%p245) target = $region32
      $region31: #{tpu_custom_call.1} parent=5 // pred_region
        %s249 = ssub.s32 %s24, 1
        %s250 = sand.u32 %s37, 1
        %s251 = scalar_lea.sflag [#allocation3], %s250
        %s252 = sand.u32 %s37, 1
        %s253 = scalar_lea.vmem [#allocation2], %s252
        // Predicated region
        $region33: #{tpu_custom_call.1} parent=31 // pred_check
          %p254 = pneg %p50
        $region34: #{tpu_custom_call.1} parent=31 // pred_check_branch
          %256 = sbr.rel (%p254) target = $region36
        $region35: #{tpu_custom_call.1} parent=31 // pred_region
          %257 = dma.done %s251, 16
        $region36: #{tpu_custom_call.1} parent=31 // pred_fallthru
          _
        %s258 = sand.u32 %s89, 1
        %s259 = scalar_lea.sflag [#allocation6], %s258
        %s260 = sand.u32 %s89, 1
        %s261 = smul.addr %s260, 128
        %s262 = scalar_lea.vmem [#allocation5], %s261
        // Predicated region
        $region37: #{tpu_custom_call.1} parent=31 // pred_check
          %p263 = pneg %p102
        $region38: #{tpu_custom_call.1} parent=31 // pred_check_branch
          %265 = sbr.rel (%p263) target = $region40
        $region39: #{tpu_custom_call.1} parent=31 // pred_region
          %266 = dma.done %s259, 2048
        $region40: #{tpu_custom_call.1} parent=31 // pred_fallthru
          _
        %s267 = sand.u32 %s37, 1
        %s268 = scalar_lea.sflag [#allocation3], %s267
        %s269 = sand.u32 %s37, 1
        %s270 = scalar_lea.vmem [#allocation2], %s269
        %p271 = pneg %p50
        %p272 = pneg %p47
        %p273 = scmp.lt.s32.totalorder %s29, 1
        %s274 = scalar_select %p273, %s29, 1
        %s275 = scalar_lea.vmem %s1, %s274
        %p276 = pneg %p76
        %p277 = pneg %p73
        %s278 = sand.u32 %s89, 1
        %s279 = scalar_lea.sflag [#allocation6], %s278
        %s280 = sand.u32 %s89, 1
        %s281 = smul.addr %s280, 128
        %s282 = scalar_lea.vmem [#allocation5], %s281
        %p283 = pneg %p102
        %p284 = pneg %p99
        %p285 = pneg %p128
        %p286 = pneg %p125
        %s287 = sand.u32 %s115, 1
        %s288 = scalar_lea.sflag [#allocation4], %s287
        %s289 = sand.u32 %s115, 1
        %s290 = smul.addr %s289, 4
        %s291 = scalar_lea.vmem [#allocation7], %s290
        %p292 = pneg %p154
        %p293 = pneg %p151
        %p294 = scmp.lt.s32.totalorder %s29, 1
        %s295 = scalar_select %p294, %s29, 1
        %s296 = smul.addr %s295, 4
        %s297 = scalar_lea.vmem %s4, %s296
        %p298 = pneg %p180
        %p299 = pneg %p177
        %s300 = sand.u32 %s167, 1
        %s301 = scalar_lea.sflag [#allocation9], %s300
        %s302 = sand.u32 %s167, 1
        %s303 = scalar_lea.vmem [#allocation8], %s302
        %p304 = scmp.lt.s32.totalorder %s29, 1
        %s305 = scalar_select %p304, %s29, 1
        %s306 = scalar_lea.vmem %s1, %s305
        %p307 = scmp.lt.s32.totalorder %s29, 1
        %s308 = scalar_select %p307, %s29, 1
        %s309 = smul.addr %s308, 4
        %s310 = scalar_lea.vmem %s4, %s309
        %v311 = vld [vmem:[%s253] sm:$0x1]
        %v312 = vld [vmem:[%s306] sm:$0x1]
        %v313 = vld [vmem:[%s262] sm:$0xff]
        %v314 = vld [vmem:[%s262 + $0x8] sm:$0xff]
        %v315 = vld [vmem:[%s262 + $0x10] sm:$0xff]
        %v316 = vld [vmem:[%s262 + $0x18] sm:$0xff]
        %v317 = vld [vmem:[%s262 + $0x20] sm:$0xff]
        %v318 = vld [vmem:[%s262 + $0x28] sm:$0xff]
        %v319 = vld [vmem:[%s262 + $0x30] sm:$0xff]
        %v320 = vld [vmem:[%s262 + $0x38] sm:$0xff]
        %v321 = vld [vmem:[%s262 + $0x40] sm:$0xff]
        %v322 = vld [vmem:[%s262 + $0x48] sm:$0xff]
        %v323 = vld [vmem:[%s262 + $0x50] sm:$0xff]
        %v324 = vld [vmem:[%s262 + $0x58] sm:$0xff]
        %v325 = vld [vmem:[%s262 + $0x60] sm:$0xff]
        %v326 = vld [vmem:[%s262 + $0x68] sm:$0xff]
        %v327 = vld [vmem:[%s262 + $0x70] sm:$0xff]
        %v328 = vld [vmem:[%s262 + $0x78] sm:$0xff]
        %v329 = vlaneseq
        %v330 = vand.u32 %v329, 127
        %vm331 = vcmask 1040384
        %v332 = vsel %vm331, %v311, -inf
        %333 = vmax.xlane.f32.xlu0 %v332
        %v334 = vpop.xlane.xlu0 %333
        %vm335 = vcmp.eq.s32.totalorder %v330, 0
        %v336 = vadd.f32 %v334, 100.0
        %v337 = vsel %vm335, %v336, %v311
        %vm338 = vcmp.gt.f32.partialorder %v312, 0.5
        %v339 = vsel %vm338, 0.0, -10000.0
        %vm340 = vcmp.lt.s32.totalorder %v330, 0
        %v341 = vadd.f32 %v337, %v339
        %v342 = vmul.f32 %v341, 10.0
        %v343 = vsel %vm331, %v342, -inf
        %344 = vmax.xlane.f32.xlu0 %v343
        %v345 = vpop.xlane.xlu0 %344
        %v346 = vsub.f32 %v342, %v345
        %v347 = vmul.f32 %v346, 1.442695
        %v348 = vpow.pop %v347
        %v349 = vsel %vm331, %v348, 0.0
        %350 = vadd.xlane.f32.xlu0 %v349
        %v351 = vpop.xlane.xlu0 %350
        %v352 = vrcp.pop %v351
        %v353 = vmul.f32 %v348, %v352
        %v354 = vsel %vm340, 0.0, %v353
        %v355 = vsel %vm331, %v354, -inf
        %356 = vmax.xlane.f32.xlu0 %v355
        %v357 = vpop.xlane.xlu0 %356
        %vm358 = vcmp.eq.f32.partialorder %v354, %v357
        %v359 = vsel %vm358, %v330, 128
        %v360 = vsel %vm331, %v359, 2147483647
        %v361 = vand.u32 %v360, 65535
        %v362 = vshra.s32 %v360, 16
        %v363 = vcvt.s32.f32 %v361
        %v364 = vcvt.s32.f32 %v362
        %365 = vmin.xlane.f32.xlu0 %v364
        %v366 = vpop.xlane.xlu0 %365
        %vm367 = vcmp.eq.f32.partialorder %v364, %v366
        %v368 = vsel %vm367, %v363, inf
        %369 = vmin.xlane.f32.xlu0 %v368
        %v370 = vpop.xlane.xlu0 %369
        %v371 = vcvt.f32.s32 %v370
        %v372 = vcvt.f32.s32 %v366
        %v373 = vshll.u32 %v372, 16
        %v374 = vadd.s32 %v373, %v371
        %vm375 = vcmp.eq.s32.totalorder %v330, %v374
        %vm376 = vmor %vm340, %vm375
        %v377 = vsel %vm375, -10000.0, %v339
        %v378 = vsel %vm335, %v374, 0
        %v379 = vadd.f32 %v337, %v377
        %v380 = vmul.f32 %v379, 10.0
        %v381 = vsel %vm331, %v380, -inf
        %382 = vmax.xlane.f32.xlu0 %v381
        %v383 = vpop.xlane.xlu0 %382
        %v384 = vsub.f32 %v380, %v383
        %v385 = vmul.f32 %v384, 1.442695
        %v386 = vpow.pop %v385
        %v387 = vsel %vm331, %v386, 0.0
        %388 = vadd.xlane.f32.xlu0 %v387
        %v389 = vpop.xlane.xlu0 %388
        %v390 = vrcp.pop %v389
        %v391 = vmul.f32 %v386, %v390
        %v392 = vsel %vm376, 0.0, %v391
        %v393 = vsel %vm331, %v392, -inf
        %394 = vmax.xlane.f32.xlu0 %v393
        %v395 = vpop.xlane.xlu0 %394
        %vm396 = vcmp.eq.f32.partialorder %v392, %v395
        %v397 = vsel %vm396, %v330, 128
        %v398 = vsel %vm331, %v397, 2147483647
        %v399 = vand.u32 %v398, 65535
        %v400 = vshra.s32 %v398, 16
        %v401 = vcvt.s32.f32 %v399
        %v402 = vcvt.s32.f32 %v400
        %403 = vmin.xlane.f32.xlu0 %v402
        %v404 = vpop.xlane.xlu0 %403
        %vm405 = vcmp.eq.f32.partialorder %v402, %v404
        %v406 = vsel %vm405, %v401, inf
        %407 = vmin.xlane.f32.xlu0 %v406
        %v408 = vpop.xlane.xlu0 %407
        %v409 = vcvt.f32.s32 %v408
        %v410 = vcvt.f32.s32 %v404
        %v411 = vshll.u32 %v410, 16
        %v412 = vadd.s32 %v411, %v409
        %vm413 = vcmp.eq.s32.totalorder %v330, %v412
        %vm414 = vmor %vm376, %vm413
        %v415 = vsel %vm413, -10000.0, %v377
        %vm416 = vcmp.eq.s32.totalorder %v330, 1
        %v417 = vsel %vm416, %v412, %v378
        %v418 = vadd.f32 %v337, %v415
        %v419 = vmul.f32 %v418, 10.0
        %v420 = vsel %vm331, %v419, -inf
        %421 = vmax.xlane.f32.xlu0 %v420
        %v422 = vpop.xlane.xlu0 %421
        %v423 = vsub.f32 %v419, %v422
        %v424 = vmul.f32 %v423, 1.442695
        %v425 = vpow.pop %v424
        %v426 = vsel %vm331, %v425, 0.0
        %427 = vadd.xlane.f32.xlu0 %v426
        %v428 = vpop.xlane.xlu0 %427
        %v429 = vrcp.pop %v428
        %v430 = vmul.f32 %v425, %v429
        %v431 = vsel %vm414, 0.0, %v430
        %v432 = vsel %vm331, %v431, -inf
        %433 = vmax.xlane.f32.xlu0 %v432
        %v434 = vpop.xlane.xlu0 %433
        %vm435 = vcmp.eq.f32.partialorder %v431, %v434
        %v436 = vsel %vm435, %v330, 128
        %v437 = vsel %vm331, %v436, 2147483647
        %v438 = vand.u32 %v437, 65535
        %v439 = vshra.s32 %v437, 16
        %v440 = vcvt.s32.f32 %v438
        %v441 = vcvt.s32.f32 %v439
        %442 = vmin.xlane.f32.xlu0 %v441
        %v443 = vpop.xlane.xlu0 %442
        %vm444 = vcmp.eq.f32.partialorder %v441, %v443
        %v445 = vsel %vm444, %v440, inf
        %446 = vmin.xlane.f32.xlu0 %v445
        %v447 = vpop.xlane.xlu0 %446
        %v448 = vcvt.f32.s32 %v447
        %v449 = vcvt.f32.s32 %v443
        %v450 = vshll.u32 %v449, 16
        %v451 = vadd.s32 %v450, %v448
        %vm452 = vcmp.eq.s32.totalorder %v330, %v451
        %vm453 = vmor %vm414, %vm452
        %v454 = vsel %vm452, -10000.0, %v415
        %vm455 = vcmp.eq.s32.totalorder %v330, 2
        %v456 = vsel %vm455, %v451, %v417
        %v457 = vadd.f32 %v337, %v454
        %v458 = vmul.f32 %v457, 10.0
        %v459 = vsel %vm331, %v458, -inf
        %460 = vmax.xlane.f32.xlu0 %v459
        %v461 = vpop.xlane.xlu0 %460
        %v462 = vsub.f32 %v458, %v461
        %v463 = vmul.f32 %v462, 1.442695
        %v464 = vpow.pop %v463
        %v465 = vsel %vm331, %v464, 0.0
        %466 = vadd.xlane.f32.xlu0 %v465
        %v467 = vpop.xlane.xlu0 %466
        %v468 = vrcp.pop %v467
        %v469 = vmul.f32 %v464, %v468
        %v470 = vsel %vm453, 0.0, %v469
        %v471 = vsel %vm331, %v470, -inf
        %472 = vmax.xlane.f32.xlu0 %v471
        %v473 = vpop.xlane.xlu0 %472
        %vm474 = vcmp.eq.f32.partialorder %v470, %v473
        %v475 = vsel %vm474, %v330, 128
        %v476 = vsel %vm331, %v475, 2147483647
        %v477 = vand.u32 %v476, 65535
        %v478 = vshra.s32 %v476, 16
        %v479 = vcvt.s32.f32 %v477
        %v480 = vcvt.s32.f32 %v478
        %481 = vmin.xlane.f32.xlu0 %v480
        %v482 = vpop.xlane.xlu0 %481
        %vm483 = vcmp.eq.f32.partialorder %v480, %v482
        %v484 = vsel %vm483, %v479, inf
        %485 = vmin.xlane.f32.xlu0 %v484
        %v486 = vpop.xlane.xlu0 %485
        %v487 = vcvt.f32.s32 %v486
        %v488 = vcvt.f32.s32 %v482
        %v489 = vshll.u32 %v488, 16
        %v490 = vadd.s32 %v489, %v487
        %vm491 = vcmp.eq.s32.totalorder %v330, %v490
        %vm492 = vmor %vm453, %vm491
        %vm493 = vcmp.eq.s32.totalorder %v330, 3
        %v494 = vsel %vm493, %v490, %v456
        %v495 = vsel %vm492, 1, 0
        %v496 = vcvt.s32.f32 %v495
        %v497 = vlaneseq
        %v498 = vshrl.u32 %v497, 7
        %v499 = vadd.s32 %v498, 8
        %v500 = vadd.s32 %v498, 16
        %v501 = vadd.s32 %v498, 24
        %v502 = vadd.s32 %v498, 32
        %v503 = vadd.s32 %v498, 40
        %v504 = vadd.s32 %v498, 48
        %v505 = vadd.s32 %v498, 56
        %v506 = vadd.s32 %v498, 64
        %v507 = vadd.s32 %v498, 72
        %v508 = vadd.s32 %v498, 80
        %v509 = vadd.s32 %v498, 88
        %v510 = vadd.s32 %v498, 96
        %v511 = vadd.s32 %v498, 104
        %v512 = vadd.s32 %v498, 112
        %v513 = vadd.s32 %v498, 120
        %vm514 = vcmp.le.s32.totalorder %v498, %v330
        %vm515 = vcmp.le.s32.totalorder %v499, %v330
        %vm516 = vcmp.le.s32.totalorder %v500, %v330
        %vm517 = vcmp.le.s32.totalorder %v501, %v330
        %vm518 = vcmp.le.s32.totalorder %v502, %v330
        %vm519 = vcmp.le.s32.totalorder %v503, %v330
        %vm520 = vcmp.le.s32.totalorder %v504, %v330
        %vm521 = vcmp.le.s32.totalorder %v505, %v330
        %vm522 = vcmp.le.s32.totalorder %v506, %v330
        %vm523 = vcmp.le.s32.totalorder %v507, %v330
        %vm524 = vcmp.le.s32.totalorder %v508, %v330
        %vm525 = vcmp.le.s32.totalorder %v509, %v330
        %vm526 = vcmp.le.s32.totalorder %v510, %v330
        %vm527 = vcmp.le.s32.totalorder %v511, %v330
        %vm528 = vcmp.le.s32.totalorder %v512, %v330
        %vm529 = vcmp.le.s32.totalorder %v513, %v330
        %v530 = vsel %vm514, 1, 0
        %v531 = vsel %vm515, 1, 0
        %v532 = vsel %vm516, 1, 0
        %v533 = vsel %vm517, 1, 0
        %v534 = vsel %vm518, 1, 0
        %v535 = vsel %vm519, 1, 0
        %v536 = vsel %vm520, 1, 0
        %v537 = vsel %vm521, 1, 0
        %v538 = vsel %vm522, 1, 0
        %v539 = vsel %vm523, 1, 0
        %v540 = vsel %vm524, 1, 0
        %v541 = vsel %vm525, 1, 0
        %v542 = vsel %vm526, 1, 0
        %v543 = vsel %vm527, 1, 0
        %v544 = vsel %vm528, 1, 0
        %v545 = vsel %vm529, 1, 0
        %v546 = vcvt.s32.f32 %v530
        %v547 = vcvt.s32.f32 %v531
        %v548 = vcvt.s32.f32 %v532
        %v549 = vcvt.s32.f32 %v533
        %v550 = vcvt.s32.f32 %v534
        %v551 = vcvt.s32.f32 %v535
        %v552 = vcvt.s32.f32 %v536
        %v553 = vcvt.s32.f32 %v537
        %v554 = vcvt.s32.f32 %v538
        %v555 = vcvt.s32.f32 %v539
        %v556 = vcvt.s32.f32 %v540
        %v557 = vcvt.s32.f32 %v541
        %v558 = vcvt.s32.f32 %v542
        %v559 = vcvt.s32.f32 %v543
        %v560 = vcvt.s32.f32 %v544
        %v561 = vcvt.s32.f32 %v545
        %562 = vmatprep.subr.mxu0 0.0
        %563 = vmatpush1.msra.mxu0 %v546
        %564 = vmatprep.subr.mxu0 0.0
        %565 = vmatpush1.msra.mxu0 %v547
        %566 = vmatprep.subr.mxu0 0.0
        %567 = vmatpush1.msra.mxu0 %v548
        %568 = vmatprep.subr.mxu0 0.0
        %569 = vmatpush1.msra.mxu0 %v549
        %570 = vmatprep.subr.mxu0 0.0
        %571 = vmatpush1.msra.mxu0 %v550
        %572 = vmatprep.subr.mxu0 0.0
        %573 = vmatpush1.msra.mxu0 %v551
        %574 = vmatprep.subr.mxu0 0.0
        %575 = vmatpush1.msra.mxu0 %v552
        %576 = vmatprep.subr.mxu0 0.0
        %577 = vmatpush1.msra.mxu0 %v553
        %578 = vmatprep.subr.mxu0 0.0
        %579 = vmatpush1.msra.mxu0 %v554
        %580 = vmatprep.subr.mxu0 0.0
        %581 = vmatpush1.msra.mxu0 %v555
        %582 = vmatprep.subr.mxu0 0.0
        %583 = vmatpush1.msra.mxu0 %v556
        %584 = vmatprep.subr.mxu0 0.0
        %585 = vmatpush1.msra.mxu0 %v557
        %586 = vmatprep.subr.mxu0 0.0
        %587 = vmatpush1.msra.mxu0 %v558
        %588 = vmatprep.subr.mxu0 0.0
        %589 = vmatpush1.msra.mxu0 %v559
        %590 = vmatprep.subr.mxu0 0.0
        %591 = vmatpush1.msra.mxu0 %v560
        %592 = vmatprep.subr.mxu0 0.0
        %593 = vmatpush1.msra.mxu0 %v561
        %594 = vmatprep.subr.mxu0 0.0
        %595 = vmatpush1.msra.mxu0 0.0
        %596 = vmatprep.subr.mxu0 0.0
        %597 = vmatpush1.msra.mxu0 0.0
        %598 = vmatprep.subr.mxu0 0.0
        %599 = vmatpush1.msra.mxu0 0.0
        %600 = vmatprep.subr.mxu0 0.0
        %601 = vmatpush1.msra.mxu0 0.0
        %602 = vmatprep.subr.mxu0 0.0
        %603 = vmatpush1.msra.mxu0 0.0
        %604 = vmatprep.subr.mxu0 0.0
        %605 = vmatpush1.msra.mxu0 0.0
        %606 = vmatprep.subr.mxu0 0.0
        %607 = vmatpush1.msra.mxu0 0.0
        %608 = vmatprep.subr.mxu0 0.0
        %609 = vmatpush1.msra.mxu0 0.0
        %610 = vmatprep.subr.mxu0 0.0
        %611 = vmatpush1.msra.mxu0 0.0
        %612 = vmatprep.subr.mxu0 0.0
        %613 = vmatpush1.msra.mxu0 0.0
        %614 = vmatprep.subr.mxu0 0.0
        %615 = vmatpush1.msra.mxu0 0.0
        %616 = vmatprep.subr.mxu0 0.0
        %617 = vmatpush1.msra.mxu0 0.0
        %618 = vmatprep.subr.mxu0 0.0
        %619 = vmatpush1.msra.mxu0 0.0
        %620 = vmatprep.subr.mxu0 0.0
        %621 = vmatpush1.msra.mxu0 0.0
        %622 = vmatprep.subr.mxu0 0.0
        %623 = vmatpush1.msra.mxu0 0.0
        %624 = vmatprep.subr.mxu0 0.0
        %625 = vmatpush1.msra.mxu0 0.0
        %626 = vmatprep.mubr.f32.mxu0 0.0
        %627 = vmatmul.mubr.f32.gmra.mrb[0].mxu0 %v496
        %v628 = vpop.f32.mrb[0].mxu0
        %v629 = vadd.f32 0.0, %v628
        %v630 = vpop.f32.mrb[0].mxu0
        %631 = vdwg.mxu0
        %v632 = vmul.f32 %v629, %v496
        %v633 = vadd.s32 %v498, 1
        %v634 = vcvt.s32.f32 %v633
        %v635 = vlaneseq
        %v636 = vshrl.u32 %v635, 7
        %v637 = vsub.s32 0, %v636
        %v638 = vrot.slane %v632, %v637
        %vm639 = vcmp.eq.f32.partialorder %v638, %v634
        %v640 = vsel %vm639, 1, 0
        %v641 = vcvt.s32.f32 %v640
        %642 = vmatprep.subr.mxu0 0.0
        %v643 = vand.u32 %v313, 4294901760
        %644 = vmatpush1.msra.mxu0 %v643
        %645 = vmatprep.subr.mxu0 0.0
        %v646 = vand.u32 %v314, 4294901760
        %647 = vmatpush1.msra.mxu0 %v646
        %648 = vmatprep.subr.mxu0 0.0
        %v649 = vand.u32 %v315, 4294901760
        %650 = vmatpush1.msra.mxu0 %v649
        %651 = vmatprep.subr.mxu0 0.0
        %v652 = vand.u32 %v316, 4294901760
        %653 = vmatpush1.msra.mxu0 %v652
        %654 = vmatprep.subr.mxu0 0.0
        %v655 = vand.u32 %v317, 4294901760
        %656 = vmatpush1.msra.mxu0 %v655
        %657 = vmatprep.subr.mxu0 0.0
        %v658 = vand.u32 %v318, 4294901760
        %659 = vmatpush1.msra.mxu0 %v658
        %660 = vmatprep.subr.mxu0 0.0
        %v661 = vand.u32 %v319, 4294901760
        %662 = vmatpush1.msra.mxu0 %v661
        %663 = vmatprep.subr.mxu0 0.0
        %v664 = vand.u32 %v320, 4294901760
        %665 = vmatpush1.msra.mxu0 %v664
        %666 = vmatprep.subr.mxu0 0.0
        %v667 = vand.u32 %v321, 4294901760
        %668 = vmatpush1.msra.mxu0 %v667
        %669 = vmatprep.subr.mxu0 0.0
        %v670 = vand.u32 %v322, 4294901760
        %671 = vmatpush1.msra.mxu0 %v670
        %672 = vmatprep.subr.mxu0 0.0
        %v673 = vand.u32 %v323, 4294901760
        %674 = vmatpush1.msra.mxu0 %v673
        %675 = vmatprep.subr.mxu0 0.0
        %v676 = vand.u32 %v324, 4294901760
        %677 = vmatpush1.msra.mxu0 %v676
        %678 = vmatprep.subr.mxu0 0.0
        %v679 = vand.u32 %v325, 4294901760
        %680 = vmatpush1.msra.mxu0 %v679
        %681 = vmatprep.subr.mxu0 0.0
        %v682 = vand.u32 %v326, 4294901760
        %683 = vmatpush1.msra.mxu0 %v682
        %684 = vmatprep.subr.mxu0 0.0
        %v685 = vand.u32 %v327, 4294901760
        %686 = vmatpush1.msra.mxu0 %v685
        %687 = vmatprep.subr.mxu0 0.0
        %v688 = vand.u32 %v328, 4294901760
        %689 = vmatpush1.msra.mxu0 %v688
        %690 = vmatprep.subr.mxu0 0.0
        %691 = vmatpush1.msra.mxu0 0.0
        %692 = vmatprep.subr.mxu0 0.0
        %693 = vmatpush1.msra.mxu0 0.0
        %694 = vmatprep.subr.mxu0 0.0
        %695 = vmatpush1.msra.mxu0 0.0
        %696 = vmatprep.subr.mxu0 0.0
        %697 = vmatpush1.msra.mxu0 0.0
        %698 = vmatprep.subr.mxu0 0.0
        %699 = vmatpush1.msra.mxu0 0.0
        %700 = vmatprep.subr.mxu0 0.0
        %701 = vmatpush1.msra.mxu0 0.0
        %702 = vmatprep.subr.mxu0 0.0
        %703 = vmatpush1.msra.mxu0 0.0
        %704 = vmatprep.subr.mxu0 0.0
        %705 = vmatpush1.msra.mxu0 0.0
        %706 = vmatprep.subr.mxu0 0.0
        %707 = vmatpush1.msra.mxu0 0.0
        %708 = vmatprep.subr.mxu0 0.0
        %709 = vmatpush1.msra.mxu0 0.0
        %710 = vmatprep.subr.mxu0 0.0
        %711 = vmatpush1.msra.mxu0 0.0
        %712 = vmatprep.subr.mxu0 0.0
        %713 = vmatpush1.msra.mxu0 0.0
        %714 = vmatprep.subr.mxu0 0.0
        %715 = vmatpush1.msra.mxu0 0.0
        %716 = vmatprep.subr.mxu0 0.0
        %717 = vmatpush1.msra.mxu0 0.0
        %718 = vmatprep.subr.mxu0 0.0
        %719 = vmatpush1.msra.mxu0 0.0
        %720 = vmatprep.subr.mxu0 0.0
        %721 = vmatpush1.msra.mxu0 0.0
        %722 = vmatprep.mubr.f32.mxu0 0.0
        %v723 = vand.u32 %v641, 4294901760
        %v724 = vsub.f32 %v641, %v723
        %v725 = vand.u32 %v724, 4294901760
        %v726 = vsub.f32 %v724, %v725
        %v727 = vand.u32 %v726, 4294901760
        %728 = vmatmul.mubr.f32.gmra.mrb[0].mxu0 %v727
        %v729 = vpop.f32.mrb[0].mxu0
        %v730 = vadd.f32 0.0, %v729
        %v731 = vpop.f32.mrb[0].mxu0
        %732 = vdwg.mxu0
        %733 = vmatprep.subr.mxu0 0.0
        %v734 = vand.u32 %v313, 4294901760
        %v735 = vsub.f32 %v313, %v734
        %v736 = vand.u32 %v735, 4294901760
        %v737 = vsub.f32 %v735, %v736
        %v738 = vand.u32 %v737, 4294901760
        %739 = vmatpush1.msra.mxu0 %v738
        %740 = vmatprep.subr.mxu0 0.0
        %v741 = vand.u32 %v314, 4294901760
        %v742 = vsub.f32 %v314, %v741
        %v743 = vand.u32 %v742, 4294901760
        %v744 = vsub.f32 %v742, %v743
        %v745 = vand.u32 %v744, 4294901760
        %746 = vmatpush1.msra.mxu0 %v745
        %747 = vmatprep.subr.mxu0 0.0
        %v748 = vand.u32 %v315, 4294901760
        %v749 = vsub.f32 %v315, %v748
        %v750 = vand.u32 %v749, 4294901760
        %v751 = vsub.f32 %v749, %v750
        %v752 = vand.u32 %v751, 4294901760
        %753 = vmatpush1.msra.mxu0 %v752
        %754 = vmatprep.subr.mxu0 0.0
        %v755 = vand.u32 %v316, 4294901760
        %v756 = vsub.f32 %v316, %v755
        %v757 = vand.u32 %v756, 4294901760
        %v758 = vsub.f32 %v756, %v757
        %v759 = vand.u32 %v758, 4294901760
        %760 = vmatpush1.msra.mxu0 %v759
        %761 = vmatprep.subr.mxu0 0.0
        %v762 = vand.u32 %v317, 4294901760
        %v763 = vsub.f32 %v317, %v762
        %v764 = vand.u32 %v763, 4294901760
        %v765 = vsub.f32 %v763, %v764
        %v766 = vand.u32 %v765, 4294901760
        %767 = vmatpush1.msra.mxu0 %v766
        %768 = vmatprep.subr.mxu0 0.0
        %v769 = vand.u32 %v318, 4294901760
        %v770 = vsub.f32 %v318, %v769
        %v771 = vand.u32 %v770, 4294901760
        %v772 = vsub.f32 %v770, %v771
        %v773 = vand.u32 %v772, 4294901760
        %774 = vmatpush1.msra.mxu0 %v773
        %775 = vmatprep.subr.mxu0 0.0
        %v776 = vand.u32 %v319, 4294901760
        %v777 = vsub.f32 %v319, %v776
        %v778 = vand.u32 %v777, 4294901760
        %v779 = vsub.f32 %v777, %v778
        %v780 = vand.u32 %v779, 4294901760
        %781 = vmatpush1.msra.mxu0 %v780
        %782 = vmatprep.subr.mxu0 0.0
        %v783 = vand.u32 %v320, 4294901760
        %v784 = vsub.f32 %v320, %v783
        %v785 = vand.u32 %v784, 4294901760
        %v786 = vsub.f32 %v784, %v785
        %v787 = vand.u32 %v786, 4294901760
        %788 = vmatpush1.msra.mxu0 %v787
        %789 = vmatprep.subr.mxu0 0.0
        %v790 = vand.u32 %v321, 4294901760
        %v791 = vsub.f32 %v321, %v790
        %v792 = vand.u32 %v791, 4294901760
        %v793 = vsub.f32 %v791, %v792
        %v794 = vand.u32 %v793, 4294901760
        %795 = vmatpush1.msra.mxu0 %v794
        %796 = vmatprep.subr.mxu0 0.0
        %v797 = vand.u32 %v322, 4294901760
        %v798 = vsub.f32 %v322, %v797
        %v799 = vand.u32 %v798, 4294901760
        %v800 = vsub.f32 %v798, %v799
        %v801 = vand.u32 %v800, 4294901760
        %802 = vmatpush1.msra.mxu0 %v801
        %803 = vmatprep.subr.mxu0 0.0
        %v804 = vand.u32 %v323, 4294901760
        %v805 = vsub.f32 %v323, %v804
        %v806 = vand.u32 %v805, 4294901760
        %v807 = vsub.f32 %v805, %v806
        %v808 = vand.u32 %v807, 4294901760
        %809 = vmatpush1.msra.mxu0 %v808
        %810 = vmatprep.subr.mxu0 0.0
        %v811 = vand.u32 %v324, 4294901760
        %v812 = vsub.f32 %v324, %v811
        %v813 = vand.u32 %v812, 4294901760
        %v814 = vsub.f32 %v812, %v813
        %v815 = vand.u32 %v814, 4294901760
        %816 = vmatpush1.msra.mxu0 %v815
        %817 = vmatprep.subr.mxu0 0.0
        %v818 = vand.u32 %v325, 4294901760
        %v819 = vsub.f32 %v325, %v818
        %v820 = vand.u32 %v819, 4294901760
        %v821 = vsub.f32 %v819, %v820
        %v822 = vand.u32 %v821, 4294901760
        %823 = vmatpush1.msra.mxu0 %v822
        %824 = vmatprep.subr.mxu0 0.0
        %v825 = vand.u32 %v326, 4294901760
        %v826 = vsub.f32 %v326, %v825
        %v827 = vand.u32 %v826, 4294901760
        %v828 = vsub.f32 %v826, %v827
        %v829 = vand.u32 %v828, 4294901760
        %830 = vmatpush1.msra.mxu0 %v829
        %831 = vmatprep.subr.mxu0 0.0
        %v832 = vand.u32 %v327, 4294901760
        %v833 = vsub.f32 %v327, %v832
        %v834 = vand.u32 %v833, 4294901760
        %v835 = vsub.f32 %v833, %v834
        %v836 = vand.u32 %v835, 4294901760
        %837 = vmatpush1.msra.mxu0 %v836
        %838 = vmatprep.subr.mxu0 0.0
        %v839 = vand.u32 %v328, 4294901760
        %v840 = vsub.f32 %v328, %v839
        %v841 = vand.u32 %v840, 4294901760
        %v842 = vsub.f32 %v840, %v841
        %v843 = vand.u32 %v842, 4294901760
        %844 = vmatpush1.msra.mxu0 %v843
        %845 = vmatprep.subr.mxu0 0.0
        %846 = vmatpush1.msra.mxu0 0.0
        %847 = vmatprep.subr.mxu0 0.0
        %848 = vmatpush1.msra.mxu0 0.0
        %849 = vmatprep.subr.mxu0 0.0
        %850 = vmatpush1.msra.mxu0 0.0
        %851 = vmatprep.subr.mxu0 0.0
        %852 = vmatpush1.msra.mxu0 0.0
        %853 = vmatprep.subr.mxu0 0.0
        %854 = vmatpush1.msra.mxu0 0.0
        %855 = vmatprep.subr.mxu0 0.0
        %856 = vmatpush1.msra.mxu0 0.0
        %857 = vmatprep.subr.mxu0 0.0
        %858 = vmatpush1.msra.mxu0 0.0
        %859 = vmatprep.subr.mxu0 0.0
        %860 = vmatpush1.msra.mxu0 0.0
        %861 = vmatprep.subr.mxu0 0.0
        %862 = vmatpush1.msra.mxu0 0.0
        %863 = vmatprep.subr.mxu0 0.0
        %864 = vmatpush1.msra.mxu0 0.0
        %865 = vmatprep.subr.mxu0 0.0
        %866 = vmatpush1.msra.mxu0 0.0
        %867 = vmatprep.subr.mxu0 0.0
        %868 = vmatpush1.msra.mxu0 0.0
        %869 = vmatprep.subr.mxu0 0.0
        %870 = vmatpush1.msra.mxu0 0.0
        %871 = vmatprep.subr.mxu0 0.0
        %872 = vmatpush1.msra.mxu0 0.0
        %873 = vmatprep.subr.mxu0 0.0
        %874 = vmatpush1.msra.mxu0 0.0
        %875 = vmatprep.subr.mxu0 0.0
        %876 = vmatpush1.msra.mxu0 0.0
        %877 = vmatprep.mubr.f32.mxu0 0.0
        %v878 = vand.u32 %v641, 4294901760
        %879 = vmatmul.mubr.f32.gmra.mrb[0].mxu0 %v878
        %v880 = vpop.f32.mrb[0].mxu0
        %v881 = vadd.f32 %v730, %v880
        %v882 = vpop.f32.mrb[0].mxu0
        %883 = vdwg.mxu0
        %884 = vmatprep.subr.mxu0 0.0
        %v885 = vand.u32 %v313, 4294901760
        %v886 = vsub.f32 %v313, %v885
        %887 = vmatpush1.msra.mxu0 %v886
        %888 = vmatprep.subr.mxu0 0.0
        %v889 = vand.u32 %v314, 4294901760
        %v890 = vsub.f32 %v314, %v889
        %891 = vmatpush1.msra.mxu0 %v890
        %892 = vmatprep.subr.mxu0 0.0
        %v893 = vand.u32 %v315, 4294901760
        %v894 = vsub.f32 %v315, %v893
        %895 = vmatpush1.msra.mxu0 %v894
        %896 = vmatprep.subr.mxu0 0.0
        %v897 = vand.u32 %v316, 4294901760
        %v898 = vsub.f32 %v316, %v897
        %899 = vmatpush1.msra.mxu0 %v898
        %900 = vmatprep.subr.mxu0 0.0
        %v901 = vand.u32 %v317, 4294901760
        %v902 = vsub.f32 %v317, %v901
        %903 = vmatpush1.msra.mxu0 %v902
        %904 = vmatprep.subr.mxu0 0.0
        %v905 = vand.u32 %v318, 4294901760
        %v906 = vsub.f32 %v318, %v905
        %907 = vmatpush1.msra.mxu0 %v906
        %908 = vmatprep.subr.mxu0 0.0
        %v909 = vand.u32 %v319, 4294901760
        %v910 = vsub.f32 %v319, %v909
        %911 = vmatpush1.msra.mxu0 %v910
        %912 = vmatprep.subr.mxu0 0.0
        %v913 = vand.u32 %v320, 4294901760
        %v914 = vsub.f32 %v320, %v913
        %915 = vmatpush1.msra.mxu0 %v914
        %916 = vmatprep.subr.mxu0 0.0
        %v917 = vand.u32 %v321, 4294901760
        %v918 = vsub.f32 %v321, %v917
        %919 = vmatpush1.msra.mxu0 %v918
        %920 = vmatprep.subr.mxu0 0.0
        %v921 = vand.u32 %v322, 4294901760
        %v922 = vsub.f32 %v322, %v921
        %923 = vmatpush1.msra.mxu0 %v922
        %924 = vmatprep.subr.mxu0 0.0
        %v925 = vand.u32 %v323, 4294901760
        %v926 = vsub.f32 %v323, %v925
        %927 = vmatpush1.msra.mxu0 %v926
        %928 = vmatprep.subr.mxu0 0.0
        %v929 = vand.u32 %v324, 4294901760
        %v930 = vsub.f32 %v324, %v929
        %931 = vmatpush1.msra.mxu0 %v930
        %932 = vmatprep.subr.mxu0 0.0
        %v933 = vand.u32 %v325, 4294901760
        %v934 = vsub.f32 %v325, %v933
        %935 = vmatpush1.msra.mxu0 %v934
        %936 = vmatprep.subr.mxu0 0.0
        %v937 = vand.u32 %v326, 4294901760
        %v938 = vsub.f32 %v326, %v937
        %939 = vmatpush1.msra.mxu0 %v938
        %940 = vmatprep.subr.mxu0 0.0
        %v941 = vand.u32 %v327, 4294901760
        %v942 = vsub.f32 %v327, %v941
        %943 = vmatpush1.msra.mxu0 %v942
        %944 = vmatprep.subr.mxu0 0.0
        %v945 = vand.u32 %v328, 4294901760
        %v946 = vsub.f32 %v328, %v945
        %947 = vmatpush1.msra.mxu0 %v946
        %948 = vmatprep.subr.mxu0 0.0
        %949 = vmatpush1.msra.mxu0 0.0
        %950 = vmatprep.subr.mxu0 0.0
        %951 = vmatpush1.msra.mxu0 0.0
        %952 = vmatprep.subr.mxu0 0.0
        %953 = vmatpush1.msra.mxu0 0.0
        %954 = vmatprep.subr.mxu0 0.0
        %955 = vmatpush1.msra.mxu0 0.0
        %956 = vmatprep.subr.mxu0 0.0
        %957 = vmatpush1.msra.mxu0 0.0
        %958 = vmatprep.subr.mxu0 0.0
        %959 = vmatpush1.msra.mxu0 0.0
        %960 = vmatprep.subr.mxu0 0.0
        %961 = vmatpush1.msra.mxu0 0.0
        %962 = vmatprep.subr.mxu0 0.0
        %963 = vmatpush1.msra.mxu0 0.0
        %964 = vmatprep.subr.mxu0 0.0
        %965 = vmatpush1.msra.mxu0 0.0
        %966 = vmatprep.subr.mxu0 0.0
        %967 = vmatpush1.msra.mxu0 0.0
        %968 = vmatprep.subr.mxu0 0.0
        %969 = vmatpush1.msra.mxu0 0.0
        %970 = vmatprep.subr.mxu0 0.0
        %971 = vmatpush1.msra.mxu0 0.0
        %972 = vmatprep.subr.mxu0 0.0
        %973 = vmatpush1.msra.mxu0 0.0
        %974 = vmatprep.subr.mxu0 0.0
        %975 = vmatpush1.msra.mxu0 0.0
        %976 = vmatprep.subr.mxu0 0.0
        %977 = vmatpush1.msra.mxu0 0.0
        %978 = vmatprep.subr.mxu0 0.0
        %979 = vmatpush1.msra.mxu0 0.0
        %980 = vmatprep.mubr.f32.mxu0 0.0
        %v981 = vand.u32 %v641, 4294901760
        %v982 = vsub.f32 %v641, %v981
        %983 = vmatmul.mubr.f32.gmra.mrb[0].mxu0 %v982
        %v984 = vpop.f32.mrb[0].mxu0
        %v985 = vadd.f32 %v881, %v984
        %v986 = vpop.f32.mrb[0].mxu0
        %987 = vdwg.mxu0
        %988 = vmatprep.subr.mxu0 0.0
        %v989 = vand.u32 %v313, 4294901760
        %990 = vmatpush1.msra.mxu0 %v989
        %991 = vmatprep.subr.mxu0 0.0
        %v992 = vand.u32 %v314, 4294901760
        %993 = vmatpush1.msra.mxu0 %v992
        %994 = vmatprep.subr.mxu0 0.0
        %v995 = vand.u32 %v315, 4294901760
        %996 = vmatpush1.msra.mxu0 %v995
        %997 = vmatprep.subr.mxu0 0.0
        %v998 = vand.u32 %v316, 4294901760
        %999 = vmatpush1.msra.mxu0 %v998
        %1000 = vmatprep.subr.mxu0 0.0
        %v1001 = vand.u32 %v317, 4294901760
        %1002 = vmatpush1.msra.mxu0 %v1001
        %1003 = vmatprep.subr.mxu0 0.0
        %v1004 = vand.u32 %v318, 4294901760
        %1005 = vmatpush1.msra.mxu0 %v1004
        %1006 = vmatprep.subr.mxu0 0.0
        %v1007 = vand.u32 %v319, 4294901760
        %1008 = vmatpush1.msra.mxu0 %v1007
        %1009 = vmatprep.subr.mxu0 0.0
        %v1010 = vand.u32 %v320, 4294901760
        %1011 = vmatpush1.msra.mxu0 %v1010
        %1012 = vmatprep.subr.mxu0 0.0
        %v1013 = vand.u32 %v321, 4294901760
        %1014 = vmatpush1.msra.mxu0 %v1013
        %1015 = vmatprep.subr.mxu0 0.0
        %v1016 = vand.u32 %v322, 4294901760
        %1017 = vmatpush1.msra.mxu0 %v1016
        %1018 = vmatprep.subr.mxu0 0.0
        %v1019 = vand.u32 %v323, 4294901760
        %1020 = vmatpush1.msra.mxu0 %v1019
        %1021 = vmatprep.subr.mxu0 0.0
        %v1022 = vand.u32 %v324, 4294901760
        %1023 = vmatpush1.msra.mxu0 %v1022
        %1024 = vmatprep.subr.mxu0 0.0
        %v1025 = vand.u32 %v325, 4294901760
        %1026 = vmatpush1.msra.mxu0 %v1025
        %1027 = vmatprep.subr.mxu0 0.0
        %v1028 = vand.u32 %v326, 4294901760
        %1029 = vmatpush1.msra.mxu0 %v1028
        %1030 = vmatprep.subr.mxu0 0.0
        %v1031 = vand.u32 %v327, 4294901760
        %1032 = vmatpush1.msra.mxu0 %v1031
        %1033 = vmatprep.subr.mxu0 0.0
        %v1034 = vand.u32 %v328, 4294901760
        %1035 = vmatpush1.msra.mxu0 %v1034
        %1036 = vmatprep.subr.mxu0 0.0
        %1037 = vmatpush1.msra.mxu0 0.0
        %1038 = vmatprep.subr.mxu0 0.0
        %1039 = vmatpush1.msra.mxu0 0.0
        %1040 = vmatprep.subr.mxu0 0.0
        %1041 = vmatpush1.msra.mxu0 0.0
        %1042 = vmatprep.subr.mxu0 0.0
        %1043 = vmatpush1.msra.mxu0 0.0
        %1044 = vmatprep.subr.mxu0 0.0
        %1045 = vmatpush1.msra.mxu0 0.0
        %1046 = vmatprep.subr.mxu0 0.0
        %1047 = vmatpush1.msra.mxu0 0.0
        %1048 = vmatprep.subr.mxu0 0.0
        %1049 = vmatpush1.msra.mxu0 0.0
        %1050 = vmatprep.subr.mxu0 0.0
        %1051 = vmatpush1.msra.mxu0 0.0
        %1052 = vmatprep.subr.mxu0 0.0
        %1053 = vmatpush1.msra.mxu0 0.0
        %1054 = vmatprep.subr.mxu0 0.0
        %1055 = vmatpush1.msra.mxu0 0.0
        %1056 = vmatprep.subr.mxu0 0.0
        %1057 = vmatpush1.msra.mxu0 0.0
        %1058 = vmatprep.subr.mxu0 0.0
        %1059 = vmatpush1.msra.mxu0 0.0
        %1060 = vmatprep.subr.mxu0 0.0
        %1061 = vmatpush1.msra.mxu0 0.0
        %1062 = vmatprep.subr.mxu0 0.0
        %1063 = vmatpush1.msra.mxu0 0.0
        %1064 = vmatprep.subr.mxu0 0.0
        %1065 = vmatpush1.msra.mxu0 0.0
        %1066 = vmatprep.subr.mxu0 0.0
        %1067 = vmatpush1.msra.mxu0 0.0
        %1068 = vmatprep.mubr.f32.mxu0 0.0
        %v1069 = vand.u32 %v641, 4294901760
        %v1070 = vsub.f32 %v641, %v1069
        %v1071 = vand.u32 %v1070, 4294901760
        %1072 = vmatmul.mubr.f32.gmra.mrb[0].mxu0 %v1071
        %v1073 = vpop.f32.mrb[0].mxu0
        %v1074 = vadd.f32 %v985, %v1073
        %v1075 = vpop.f32.mrb[0].mxu0
        %1076 = vdwg.mxu0
        %1077 = vmatprep.subr.mxu0 0.0
        %v1078 = vand.u32 %v313, 4294901760
        %v1079 = vsub.f32 %v313, %v1078
        %v1080 = vand.u32 %v1079, 4294901760
        %1081 = vmatpush1.msra.mxu0 %v1080
        %1082 = vmatprep.subr.mxu0 0.0
        %v1083 = vand.u32 %v314, 4294901760
        %v1084 = vsub.f32 %v314, %v1083
        %v1085 = vand.u32 %v1084, 4294901760
        %1086 = vmatpush1.msra.mxu0 %v1085
        %1087 = vmatprep.subr.mxu0 0.0
        %v1088 = vand.u32 %v315, 4294901760
        %v1089 = vsub.f32 %v315, %v1088
        %v1090 = vand.u32 %v1089, 4294901760
        %1091 = vmatpush1.msra.mxu0 %v1090
        %1092 = vmatprep.subr.mxu0 0.0
        %v1093 = vand.u32 %v316, 4294901760
        %v1094 = vsub.f32 %v316, %v1093
        %v1095 = vand.u32 %v1094, 4294901760
        %1096 = vmatpush1.msra.mxu0 %v1095
        %1097 = vmatprep.subr.mxu0 0.0
        %v1098 = vand.u32 %v317, 4294901760
        %v1099 = vsub.f32 %v317, %v1098
        %v1100 = vand.u32 %v1099, 4294901760
        %1101 = vmatpush1.msra.mxu0 %v1100
        %1102 = vmatprep.subr.mxu0 0.0
        %v1103 = vand.u32 %v318, 4294901760
        %v1104 = vsub.f32 %v318, %v1103
        %v1105 = vand.u32 %v1104, 4294901760
        %1106 = vmatpush1.msra.mxu0 %v1105
        %1107 = vmatprep.subr.mxu0 0.0
        %v1108 = vand.u32 %v319, 4294901760
        %v1109 = vsub.f32 %v319, %v1108
        %v1110 = vand.u32 %v1109, 4294901760
        %1111 = vmatpush1.msra.mxu0 %v1110
        %1112 = vmatprep.subr.mxu0 0.0
        %v1113 = vand.u32 %v320, 4294901760
        %v1114 = vsub.f32 %v320, %v1113
        %v1115 = vand.u32 %v1114, 4294901760
        %1116 = vmatpush1.msra.mxu0 %v1115
        %1117 = vmatprep.subr.mxu0 0.0
        %v1118 = vand.u32 %v321, 4294901760
        %v1119 = vsub.f32 %v321, %v1118
        %v1120 = vand.u32 %v1119, 4294901760
        %1121 = vmatpush1.msra.mxu0 %v1120
        %1122 = vmatprep.subr.mxu0 0.0
        %v1123 = vand.u32 %v322, 4294901760
        %v1124 = vsub.f32 %v322, %v1123
        %v1125 = vand.u32 %v1124, 4294901760
        %1126 = vmatpush1.msra.mxu0 %v1125
        %1127 = vmatprep.subr.mxu0 0.0
        %v1128 = vand.u32 %v323, 4294901760
        %v1129 = vsub.f32 %v323, %v1128
        %v1130 = vand.u32 %v1129, 4294901760
        %1131 = vmatpush1.msra.mxu0 %v1130
        %1132 = vmatprep.subr.mxu0 0.0
        %v1133 = vand.u32 %v324, 4294901760
        %v1134 = vsub.f32 %v324, %v1133
        %v1135 = vand.u32 %v1134, 4294901760
        %1136 = vmatpush1.msra.mxu0 %v1135
        %1137 = vmatprep.subr.mxu0 0.0
        %v1138 = vand.u32 %v325, 4294901760
        %v1139 = vsub.f32 %v325, %v1138
        %v1140 = vand.u32 %v1139, 4294901760
        %1141 = vmatpush1.msra.mxu0 %v1140
        %1142 = vmatprep.subr.mxu0 0.0
        %v1143 = vand.u32 %v326, 4294901760
        %v1144 = vsub.f32 %v326, %v1143
        %v1145 = vand.u32 %v1144, 4294901760
        %1146 = vmatpush1.msra.mxu0 %v1145
        %1147 = vmatprep.subr.mxu0 0.0
        %v1148 = vand.u32 %v327, 4294901760
        %v1149 = vsub.f32 %v327, %v1148
        %v1150 = vand.u32 %v1149, 4294901760
        %1151 = vmatpush1.msra.mxu0 %v1150
        %1152 = vmatprep.subr.mxu0 0.0
        %v1153 = vand.u32 %v328, 4294901760
        %v1154 = vsub.f32 %v328, %v1153
        %v1155 = vand.u32 %v1154, 4294901760
        %1156 = vmatpush1.msra.mxu0 %v1155
        %1157 = vmatprep.subr.mxu0 0.0
        %1158 = vmatpush1.msra.mxu0 0.0
        %1159 = vmatprep.subr.mxu0 0.0
        %1160 = vmatpush1.msra.mxu0 0.0
        %1161 = vmatprep.subr.mxu0 0.0
        %1162 = vmatpush1.msra.mxu0 0.0
        %1163 = vmatprep.subr.mxu0 0.0
        %1164 = vmatpush1.msra.mxu0 0.0
        %1165 = vmatprep.subr.mxu0 0.0
        %1166 = vmatpush1.msra.mxu0 0.0
        %1167 = vmatprep.subr.mxu0 0.0
        %1168 = vmatpush1.msra.mxu0 0.0
        %1169 = vmatprep.subr.mxu0 0.0
        %1170 = vmatpush1.msra.mxu0 0.0
        %1171 = vmatprep.subr.mxu0 0.0
        %1172 = vmatpush1.msra.mxu0 0.0
        %1173 = vmatprep.subr.mxu0 0.0
        %1174 = vmatpush1.msra.mxu0 0.0
        %1175 = vmatprep.subr.mxu0 0.0
        %1176 = vmatpush1.msra.mxu0 0.0
        %1177 = vmatprep.subr.mxu0 0.0
        %1178 = vmatpush1.msra.mxu0 0.0
        %1179 = vmatprep.subr.mxu0 0.0
        %1180 = vmatpush1.msra.mxu0 0.0
        %1181 = vmatprep.subr.mxu0 0.0
        %1182 = vmatpush1.msra.mxu0 0.0
        %1183 = vmatprep.subr.mxu0 0.0
        %1184 = vmatpush1.msra.mxu0 0.0
        %1185 = vmatprep.subr.mxu0 0.0
        %1186 = vmatpush1.msra.mxu0 0.0
        %1187 = vmatprep.subr.mxu0 0.0
        %1188 = vmatpush1.msra.mxu0 0.0
        %1189 = vmatprep.mubr.f32.mxu0 0.0
        %v1190 = vand.u32 %v641, 4294901760
        %1191 = vmatmul.mubr.f32.gmra.mrb[0].mxu0 %v1190
        %v1192 = vpop.f32.mrb[0].mxu0
        %v1193 = vadd.f32 %v1074, %v1192
        %v1194 = vpop.f32.mrb[0].mxu0
        %1195 = vdwg.mxu0
        %1196 = vmatprep.subr.mxu0 0.0
        %v1197 = vand.u32 %v313, 4294901760
        %1198 = vmatpush1.msra.mxu0 %v1197
        %1199 = vmatprep.subr.mxu0 0.0
        %v1200 = vand.u32 %v314, 4294901760
        %1201 = vmatpush1.msra.mxu0 %v1200
        %1202 = vmatprep.subr.mxu0 0.0
        %v1203 = vand.u32 %v315, 4294901760
        %1204 = vmatpush1.msra.mxu0 %v1203
        %1205 = vmatprep.subr.mxu0 0.0
        %v1206 = vand.u32 %v316, 4294901760
        %1207 = vmatpush1.msra.mxu0 %v1206
        %1208 = vmatprep.subr.mxu0 0.0
        %v1209 = vand.u32 %v317, 4294901760
        %1210 = vmatpush1.msra.mxu0 %v1209
        %1211 = vmatprep.subr.mxu0 0.0
        %v1212 = vand.u32 %v318, 4294901760
        %1213 = vmatpush1.msra.mxu0 %v1212
        %1214 = vmatprep.subr.mxu0 0.0
        %v1215 = vand.u32 %v319, 4294901760
        %1216 = vmatpush1.msra.mxu0 %v1215
        %1217 = vmatprep.subr.mxu0 0.0
        %v1218 = vand.u32 %v320, 4294901760
        %1219 = vmatpush1.msra.mxu0 %v1218
        %1220 = vmatprep.subr.mxu0 0.0
        %v1221 = vand.u32 %v321, 4294901760
        %1222 = vmatpush1.msra.mxu0 %v1221
        %1223 = vmatprep.subr.mxu0 0.0
        %v1224 = vand.u32 %v322, 4294901760
        %1225 = vmatpush1.msra.mxu0 %v1224
        %1226 = vmatprep.subr.mxu0 0.0
        %v1227 = vand.u32 %v323, 4294901760
        %1228 = vmatpush1.msra.mxu0 %v1227
        %1229 = vmatprep.subr.mxu0 0.0
        %v1230 = vand.u32 %v324, 4294901760
        %1231 = vmatpush1.msra.mxu0 %v1230
        %1232 = vmatprep.subr.mxu0 0.0
        %v1233 = vand.u32 %v325, 4294901760
        %1234 = vmatpush1.msra.mxu0 %v1233
        %1235 = vmatprep.subr.mxu0 0.0
        %v1236 = vand.u32 %v326, 4294901760
        %1237 = vmatpush1.msra.mxu0 %v1236
        %1238 = vmatprep.subr.mxu0 0.0
        %v1239 = vand.u32 %v327, 4294901760
        %1240 = vmatpush1.msra.mxu0 %v1239
        %1241 = vmatprep.subr.mxu0 0.0
        %v1242 = vand.u32 %v328, 4294901760
        %1243 = vmatpush1.msra.mxu0 %v1242
        %1244 = vmatprep.subr.mxu0 0.0
        %1245 = vmatpush1.msra.mxu0 0.0
        %1246 = vmatprep.subr.mxu0 0.0
        %1247 = vmatpush1.msra.mxu0 0.0
        %1248 = vmatprep.subr.mxu0 0.0
        %1249 = vmatpush1.msra.mxu0 0.0
        %1250 = vmatprep.subr.mxu0 0.0
        %1251 = vmatpush1.msra.mxu0 0.0
        %1252 = vmatprep.subr.mxu0 0.0
        %1253 = vmatpush1.msra.mxu0 0.0
        %1254 = vmatprep.subr.mxu0 0.0
        %1255 = vmatpush1.msra.mxu0 0.0
        %1256 = vmatprep.subr.mxu0 0.0
        %1257 = vmatpush1.msra.mxu0 0.0
        %1258 = vmatprep.subr.mxu0 0.0
        %1259 = vmatpush1.msra.mxu0 0.0
        %1260 = vmatprep.subr.mxu0 0.0
        %1261 = vmatpush1.msra.mxu0 0.0
        %1262 = vmatprep.subr.mxu0 0.0
        %1263 = vmatpush1.msra.mxu0 0.0
        %1264 = vmatprep.subr.mxu0 0.0
        %1265 = vmatpush1.msra.mxu0 0.0
        %1266 = vmatprep.subr.mxu0 0.0
        %1267 = vmatpush1.msra.mxu0 0.0
        %1268 = vmatprep.subr.mxu0 0.0
        %1269 = vmatpush1.msra.mxu0 0.0
        %1270 = vmatprep.subr.mxu0 0.0
        %1271 = vmatpush1.msra.mxu0 0.0
        %1272 = vmatprep.subr.mxu0 0.0
        %1273 = vmatpush1.msra.mxu0 0.0
        %1274 = vmatprep.subr.mxu0 0.0
        %1275 = vmatpush1.msra.mxu0 0.0
        %1276 = vmatprep.mubr.f32.mxu0 0.0
        %v1277 = vand.u32 %v641, 4294901760
        %1278 = vmatmul.mubr.f32.gmra.mrb[0].mxu0 %v1277
        %v1279 = vpop.f32.mrb[0].mxu0
        %v1280 = vadd.f32 %v1193, %v1279
        %v1281 = vpop.f32.mrb[0].mxu0
        %1282 = vdwg.mxu0
        %1283 = vst [vmem:[%s291] sm:$0xf] %v1280
        %v1285 = vlaneseq
        %v1286 = vshrl.u32 %v1285, 7
        %v1287 = vsub.s32 0, %v1286
        %v1288 = vrot.slane %v312, %v1287
        %v1290 = vmul.f32 %v641, %v1288
        %vm1291 = vcmask 1043456
        %v1292 = vsel %vm1291, %v1290, 0.0
        %1293 = vadd.xlane.f32.xlu0 %v1292
        %v1294 = vpop.xlane.xlu0 %1293
        %vm1295 = vcmask 3072
        %1296 = vst.msk [vmem:[%s310] sm:$0xf] %vm1295, %v1294
        %vm1297 = vcmask 24576
        %1298 = vst.msk [vmem:[%s303] sm:$0x1] %vm1297, %v494
        %s1299 = sand.u32 %s115, 1
        %s1300 = scalar_lea.sflag [#allocation4], %s1299
        %s1301 = sand.u32 %s115, 1
        %s1302 = smul.addr %s1301, 4
        %s1303 = scalar_lea.vmem [#allocation7], %s1302
        %p1304 = scmp.lt.s32.totalorder %s29, 1
        %s1305 = scalar_select %p1304, %s29, 1
        %s1306 = smul.addr %s1305, 4
        %s1307 = scalar_lea.vmem %s4, %s1306
        %s1308 = sand.u32 %s167, 1
        %s1309 = scalar_lea.sflag [#allocation9], %s1308
        %s1310 = sand.u32 %s167, 1
        %s1311 = scalar_lea.vmem [#allocation8], %s1310
        // Predicated region
        $region41: #{tpu_custom_call.1} parent=31 // pred_check
          %p1312 = pneg %p125
        $region42: #{tpu_custom_call.1} parent=31 // pred_check_branch
          %1314 = sbr.rel (%p1312) target = $region44
        $region43: #{tpu_custom_call.1} parent=31 // pred_region
          %s1316 = ssub.s32 64, 64
          %1317 = vsyncadd %s1300, %s1316
          %s1318 = smul.addr %s29, 64
          %s1319 = scalar_lea.hbm %s3, %s1318
          %s1321 = sshll.u32 %s1303, 4
          %s1322 = int_to_ptr.vmem [resolvable:$true] %s1321
          %1324 = dma.vmem_to_hbm [thread:$0]  %s1322, 64, %s1319, %s1300
        $region44: #{tpu_custom_call.1} parent=31 // pred_fallthru
          _
        // Predicated region
        $region45: #{tpu_custom_call.1} parent=31 // pred_check
          %p1325 = pneg %p151
        $region46: #{tpu_custom_call.1} parent=31 // pred_check_branch
          %1327 = sbr.rel (%p1325) target = $region48
        $region47: #{tpu_custom_call.1} parent=31 // pred_region
          _
        $region48: #{tpu_custom_call.1} parent=31 // pred_fallthru
          _
        // Predicated region
        $region49: #{tpu_custom_call.1} parent=31 // pred_check
          %p1328 = pneg %p177
        $region50: #{tpu_custom_call.1} parent=31 // pred_check_branch
          %1330 = sbr.rel (%p1328) target = $region52
        $region51: #{tpu_custom_call.1} parent=31 // pred_region
          %s1332 = ssub.s32 16, 16
          %1333 = vsyncadd %s1309, %s1332
          %s1334 = smul.addr %s29, 16
          %s1335 = scalar_lea.hbm %s5, %s1334
          %s1337 = sshll.u32 %s1311, 4
          %s1338 = int_to_ptr.vmem [resolvable:$true] %s1337
          %1340 = dma.vmem_to_hbm [thread:$0]  %s1338, 16, %s1335, %s1309
        $region52: #{tpu_custom_call.1} parent=31 // pred_fallthru
          _
      $region32: #{tpu_custom_call.1} parent=5 // pred_fallthru
        _
      %p1341 = scmp.le.s32.totalorder 2, %s24
      // Predicated region
      $region53: #{tpu_custom_call.1} parent=5 // pred_check
        %p1342 = pneg %p1341
      $region54: #{tpu_custom_call.1} parent=5 // pred_check_branch
        %1344 = sbr.rel (%p1342) target = $region56
      $region55: #{tpu_custom_call.1} parent=5 // pred_region
        %s1345 = ssub.s32 %s24, 2
        // Predicated region
        $region57: #{tpu_custom_call.1} parent=55 // pred_check
          %p1346 = pneg %p131
        $region58: #{tpu_custom_call.1} parent=55 // pred_check_branch
          %1348 = sbr.rel (%p1346) target = $region60
        $region59: #{tpu_custom_call.1} parent=55 // pred_region
          %s1349 = sand.u32 %s116, 1
          %s1350 = scalar_lea.sflag [#allocation4], %s1349
          %s1351 = sand.u32 %s116, 1
          %s1352 = smul.addr %s1351, 4
          %s1353 = scalar_lea.vmem [#allocation7], %s1352
          %1354 = dma.done %s1350, 64
        $region60: #{tpu_custom_call.1} parent=55 // pred_fallthru
          _
        // Predicated region
        $region61: #{tpu_custom_call.1} parent=55 // pred_check
          %p1355 = pneg %p157
        $region62: #{tpu_custom_call.1} parent=55 // pred_check_branch
          %1357 = sbr.rel (%p1355) target = $region64
        $region63: #{tpu_custom_call.1} parent=55 // pred_region
          %p1358 = scmp.lt.s32.totalorder %s30, 1
          %s1359 = scalar_select %p1358, %s30, 1
          %s1360 = smul.addr %s1359, 4
          %s1361 = scalar_lea.vmem %s4, %s1360
        $region64: #{tpu_custom_call.1} parent=55 // pred_fallthru
          _
        // Predicated region
        $region65: #{tpu_custom_call.1} parent=55 // pred_check
          %p1362 = pneg %p183
        $region66: #{tpu_custom_call.1} parent=55 // pred_check_branch
          %1364 = sbr.rel (%p1362) target = $region68
        $region67: #{tpu_custom_call.1} parent=55 // pred_region
          %s1365 = sand.u32 %s168, 1
          %s1366 = scalar_lea.sflag [#allocation9], %s1365
          %s1367 = sand.u32 %s168, 1
          %s1368 = scalar_lea.vmem [#allocation8], %s1367
          %1369 = dma.done %s1366, 16
        $region68: #{tpu_custom_call.1} parent=55 // pred_fallthru
          _
      $region56: #{tpu_custom_call.1} parent=5 // pred_fallthru
        _
    $region6: #{tpu_custom_call.1} parent=1 // loop_footer
      %s28 = sadd.s32 1, %s24
    $region7: #{tpu_custom_call.1} parent=1 // loop_footer_branch
      %23 = sbr.rel target = $region3
    $region8: #{tpu_custom_call.1} parent=1 // loop_exit
      _
    %1370 = vsyncpa [#allocation3], 1
    %s1371 = scalar_lea.sflag [#allocation3], 1
    %1372 = vsyncpa %s1371, 1
    %1373 = vsyncpa [#allocation6], 1
    %s1374 = scalar_lea.sflag [#allocation6], 1
    %1375 = vsyncpa %s1374, 1
    %1376 = vsyncpa [#allocation4], 1
    %s1377 = scalar_lea.sflag [#allocation4], 1
    %1378 = vsyncpa %s1377, 1
    %1379 = vsyncpa [#allocation9], 1
    %s1380 = scalar_lea.sflag [#allocation9], 1
    %1381 = vsyncpa %s1380, 1

</llo_original>
